<compile_context>
chip_gen: v7x
topology: tpu7x:2x2x1
jax: 0.10.0
libtpu: 0.0.40
codegen_flags: <defaults>
</compile_context>

<pallas_src>
import jax
import jax.numpy as jnp
from jax import lax
from jax.experimental import pallas as pl
from jax.experimental.pallas import tpu as pltpu


def _round_up(x, m):
    return ((x + m - 1) // m) * m


# -----------------------------------------------------------------------------
# Fused kernel: QKV projections + KV-tiled online-softmax cross attention +
# mean pool + MLP head epilogue.  Grid = (batch blocks, KV blocks).
# -----------------------------------------------------------------------------
def _make_fused_kernel(n_head, st_real, sa_real, sa_pad, block_sa):
    mask_kv = sa_pad != sa_real

    def kernel(text_ref, audio_ref,
               wq_ref, bq_ref, wk_ref, bk_ref, wv_ref, bv_ref,
               *rest):
        head_refs = rest[:2 * n_head]
        out_ref = rest[2 * n_head]
        q_scr, m_scr, l_scr, acc_scr = rest[2 * n_head + 1:]

        ka = pl.program_id(1)
        n_ka = pl.num_programs(1)

        bblk, st_pad, dt = text_ref.shape
        _, sa_blk, da = audio_ref.shape
        h = wq_ref.shape[1]

        # ---- per-batch-block init: Q projection (cached bf16) + softmax stats.
        @pl.when(ka == 0)
        def _init():
            t = text_ref[...].reshape(bblk * st_pad, dt)               # bf16
            q = (jnp.dot(t, wq_ref[...], preferred_element_type=jnp.float32)
                 + bq_ref[...])
            q_scr[...] = q.reshape(bblk, st_pad, h).astype(jnp.bfloat16)
            m_scr[...] = jnp.full(m_scr.shape, -jnp.inf, dtype=m_scr.dtype)
            l_scr[...] = jnp.zeros(l_scr.shape, dtype=l_scr.dtype)
            acc_scr[...] = jnp.zeros(acc_scr.shape, dtype=acc_scr.dtype)

        # ---- K/V projections for this KV tile: dense (bblk*sa_blk, D) matmuls.
        a = audio_ref[...].reshape(bblk * sa_blk, da)                  # bf16
        k = (jnp.dot(a, wk_ref[...], preferred_element_type=jnp.float32)
             + bk_ref[...]).reshape(bblk, sa_blk, h)
        v = (jnp.dot(a, wv_ref[...], preferred_element_type=jnp.float32)
             + bv_ref[...]).reshape(bblk, sa_blk, h)

        # ---- scores: contract last dims directly (no transpose copy); f32.
        scores = lax.dot_general(
            q_scr[...], k.astype(jnp.bfloat16),
            dimension_numbers=(((2,), (2,)), ((0,), (0,))),
            preferred_element_type=jnp.float32)          # (bblk, St_pad, sa_blk)

        if mask_kv:
            col = ka * block_sa + lax.broadcasted_iota(
                jnp.int32, (1, 1, sa_blk), 2)
            scores = jnp.where(col < sa_real, scores, -jnp.inf)

        # ---- online softmax update.
        m_prev = m_scr[...]
        m_new = jnp.maximum(m_prev, jnp.max(scores, axis=-1, keepdims=True))
        alpha = jnp.exp(m_prev - m_new)
        p = jnp.exp(scores - m_new)
        l_scr[...] = alpha * l_scr[...] + jnp.sum(p, axis=-1, keepdims=True)
        acc_scr[...] = alpha * acc_scr[...] + lax.dot_general(
            p.astype(jnp.bfloat16), v.astype(jnp.bfloat16),
            dimension_numbers=(((2,), (1,)), ((0,), (0,))),
            preferred_element_type=jnp.float32)
        m_scr[...] = m_new

        # ---- finalize: normalize, mean-pool over real text rows, MLP head.
        @pl.when(ka == n_ka - 1)
        def _fin():
            ca = acc_scr[...] * pl.reciprocal(l_scr[...], approx=False)
            if st_pad != st_real:
                row = lax.broadcasted_iota(jnp.int32, (1, st_pad, 1), 1)
                ca = jnp.where(row < st_real, ca, 0.0)
            x = jnp.sum(ca, axis=1) * (1.0 / st_real)                  # (bblk, H)
            for i in range(n_head):
                w_ref = head_refs[2 * i]
                b_ref = head_refs[2 * i + 1]
                x = jnp.dot(x.astype(jnp.bfloat16), w_ref[...],
                            preferred_element_type=jnp.float32) + b_ref[...]
                if i < n_head - 1:
                    x = jnp.maximum(x, 0.0)
            out_ref[...] = x                            # lane-dense (bblk, C_pad)

    return kernel


# -----------------------------------------------------------------------------
# Tile-size heuristics.
# -----------------------------------------------------------------------------
def _pick_block_sa(sa):
    # Sa tile: full (sublane-rounded) sequence when short, 512 (128-multiple)
    # when long enough to need KV tiling.
    if sa <= 512:
        return _round_up(sa, 8)
    return 512


def _pick_block_b(batch, st_pad, m_target):
    # Fill the MXU M dimension (block_b * St >= m_target), but keep at least
    # two parallel grid steps when the batch allows it (v7x has 2 TensorCores).
    target = max(8, min(128, _round_up(pl.cdiv(m_target, st_pad), 8)))
    bb = min(target, _round_up(batch, 8))
    if batch >= 16 and _round_up(batch, bb) // bb < 2:
        bb = max(8, _round_up((batch + 1) // 2, 8))
    return bb


# -----------------------------------------------------------------------------
# Wrapper mirroring MultimodalEarlyLateModel.forward (ca_text / mean pooling).
# -----------------------------------------------------------------------------
def multimodal_forward(text_seq, audio_seq, ca_params, head_params, *,
                       block_b=None, block_sa=None):
    B, St, Dt = text_seq.shape
    _, Sa, Da = audio_seq.shape
    H = ca_params["wq"].shape[1]
    n_head = len(head_params)
    C = head_params[-1][0].shape[1]

    LANE = 128
    C_pad = _round_up(C, LANE)
    St_pad = _round_up(St, 8)

    if block_sa is None:
        block_sa = _pick_block_sa(Sa)
    Sa_pad = _round_up(Sa, block_sa)

    # Generation-aware MXU M-fill target (v5e MXU is 128 rows; v6e/v7x 256).
    try:
        kind = jax.devices()[0].device_kind.lower()
        m_target = 128 if "v5" in kind else 256
    except Exception:  # pragma: no cover
        m_target = 256
    if block_b is None:
        block_b = _pick_block_b(B, St_pad, m_target)
    Bp = _round_up(B, block_b)

    # bf16 sequence activations: halves the HBM->VMEM DMA stream and the
    # double-buffered VMEM footprint (matmul precision unchanged: f32 acc).
    bf16 = jnp.bfloat16
    text_bf = text_seq.astype(bf16)
    audio_bf = audio_seq.astype(bf16)
    if Bp != B or St_pad != St:
        text_bf = jnp.pad(text_bf, ((0, Bp - B), (0, St_pad - St), (0, 0)))
    if Bp != B or Sa_pad != Sa:
        audio_bf = jnp.pad(audio_bf, ((0, Bp - B), (0, Sa_pad - Sa), (0, 0)))

    wq = ca_params["wq"].astype(bf16); bq = ca_params["bq"]
    wk = ca_params["wk"].astype(bf16); bk = ca_params["bk"]
    wv = ca_params["wv"].astype(bf16); bv = ca_params["bv"]

    head_flat = []
    for i, (w, b) in enumerate(head_params):
        if i == n_head - 1 and C_pad != C:
            w = jnp.pad(w, ((0, 0), (0, C_pad - C)))
            b = jnp.pad(b, ((0, 0), (0, C_pad - C)))
        head_flat += [w.astype(bf16), b]

    grid = (Bp // block_b, Sa_pad // block_sa)

    def _const_spec(shape):
        # Constant index_map => single-buffer (double buffering is VMEM waste).
        return pl.BlockSpec(shape, lambda i, ka: (0, 0),
                            pipeline_mode=pl.Buffered(1))

    in_specs = [
        pl.BlockSpec((block_b, St_pad, Dt), lambda i, ka: (i, 0, 0)),
        pl.BlockSpec((block_b, block_sa, Da), lambda i, ka: (i, ka, 0)),
        _const_spec((Dt, H)), _const_spec((1, H)),
        _const_spec((Da, H)), _const_spec((1, H)),
        _const_spec((Da, H)), _const_spec((1, H)),
    ]
    for arr in head_flat:
        in_specs.append(_const_spec(arr.shape))

    scratch_shapes = [
        pltpu.VMEM((block_b, St_pad, H), bf16),          # cached Q
        pltpu.VMEM((block_b, St_pad, 1), jnp.float32),   # m (running max)
        pltpu.VMEM((block_b, St_pad, 1), jnp.float32),   # l (running denom)
        pltpu.VMEM((block_b, St_pad, H), jnp.float32),   # acc (unnormalized PV)
    ]

    # Explicit scoped-VMEM budget sized from the actual tiles (2x headroom),
    # capped at v7x's 64 MiB physical VMEM.
    head_bytes = sum(int(a.size) * a.dtype.itemsize for a in head_flat)
    est = (
        2 * block_b * (St_pad * Dt + block_sa * Da) * 2        # seq tiles (bf16, 2 buf)
        + (Dt + 2 * Da) * H * 2 + 3 * H * 4                    # QKV weights + biases
        + head_bytes                                           # head weights + biases
        + block_b * St_pad * H * (2 + 4)                       # q (bf16) + acc (f32)
        + 2 * block_b * St_pad * 4                             # m, l
        + 4 * block_b * St_pad * block_sa * 4                  # scores / p live copies
        + 4 * block_b * block_sa * H * 4                       # k, v (+ bf16 copies)
        + 2 * block_b * C_pad * 4                              # output block
    )
    vmem_limit = int(min(64 * 2 ** 20, max(16 * 2 ** 20, 2 * est)))

    out = pl.pallas_call(
        _make_fused_kernel(n_head, St, Sa, Sa_pad, block_sa),
        out_shape=jax.ShapeDtypeStruct((Bp, C_pad), jnp.float32),
        grid=grid,
        in_specs=in_specs,
        out_specs=pl.BlockSpec((block_b, C_pad), lambda i, ka: (i, 0)),
        scratch_shapes=scratch_shapes,
        compiler_params=pltpu.CompilerParams(
            dimension_semantics=("parallel", "arbitrary"),
            vmem_limit_bytes=vmem_limit),
    )(text_bf, audio_bf, wq, bq, wk, bk, wv, bv, *head_flat)

    return {"logits": out[:B, :C]}


# -----------------------------------------------------------------------------
# Pure-JAX f32 reference (same math as the PyTorch module) for correctness.
# -----------------------------------------------------------------------------
def reference_forward(text_seq, audio_seq, ca_params, head_params):
    q = jnp.einsum("bsd,dh->bsh", text_seq, ca_params["wq"]) + ca_params["bq"]
    k = jnp.einsum("bsd,dh->bsh", audio_seq, ca_params["wk"]) + ca_params["bk"]
    v = jnp.einsum("bsd,dh->bsh", audio_seq, ca_params["wv"]) + ca_params["bv"]
    scores = jnp.einsum("bqh,bkh->bqk", q, k)
    probs = jax.nn.softmax(scores, axis=-1)
    ca = jnp.einsum("bqk,bkh->bqh", probs, v)
    x = jnp.mean(ca, axis=1)
    n_layers = len(head_params)
    for i, (w, b) in enumerate(head_params):
        x = x @ w + b
        if i < n_layers - 1:
            x = jnp.maximum(x, 0.0)
    return x


def _kaiming_normal(key, fan_in, shape):
    return (jnp.sqrt(2.0 / fan_in) * jax.random.normal(key, shape)).astype(jnp.float32)


if __name__ == "__main__":
    # Small synthetic shapes consistent with the module's forward.
    Dt = Da = 128                 # text / audio encoder hidden sizes (synthetic)
    H = Dt                        # CrossModalAttention hidden_dim (ca_text)
    head_hidden = 128             # head_hidden_size
    head_layers = 4               # head_hidden_layers
    n_classes = 4

    key = jax.random.PRNGKey(0)
    keys = jax.random.split(key, 32)

    # CrossModalAttention parameters (query_dim=Dt, kv_dim=Da, hidden_dim=H).
    ca_params = {
        "wq": _kaiming_normal(keys[2], Dt, (Dt, H)),
        "bq": 0.05 * jax.random.normal(keys[10], (1, H), dtype=jnp.float32),
        "wk": _kaiming_normal(keys[3], Da, (Da, H)),
        "bk": 0.05 * jax.random.normal(keys[11], (1, H), dtype=jnp.float32),
        "wv": _kaiming_normal(keys[4], Da, (Da, H)),
        "bv": 0.05 * jax.random.normal(keys[12], (1, H), dtype=jnp.float32),
    }

    # MLP classification head parameters ([Linear+ReLU]*L -> Linear).
    head_params = []
    in_dim = H
    for i in range(head_layers):
        head_params.append((
            _kaiming_normal(keys[5 + i], in_dim, (in_dim, head_hidden)),
            0.05 * jax.random.normal(keys[13 + i], (1, head_hidden), dtype=jnp.float32),
        ))
        in_dim = head_hidden
    head_params.append((
        _kaiming_normal(keys[5 + head_layers], in_dim, (in_dim, n_classes)),
        0.05 * jax.random.normal(keys[13 + head_layers], (1, n_classes), dtype=jnp.float32),
    ))

    # --- test 1: aligned small shapes (single KV tile, single batch block).
    B, St, Sa = 2, 8, 16
    text_seq = 0.25 * jax.random.normal(keys[0], (B, St, Dt), dtype=jnp.float32)
    audio_seq = 0.25 * jax.random.normal(keys[1], (B, Sa, Da), dtype=jnp.float32)
    out = multimodal_forward(text_seq, audio_seq, ca_params, head_params)
    logits = jax.block_until_ready(out["logits"])
    assert logits.shape == (B, n_classes), logits.shape
    ref = reference_forward(text_seq, audio_seq, ca_params, head_params)
    assert jnp.allclose(logits, ref, rtol=2e-2, atol=2e-2), (logits, ref)

    # --- test 2: unaligned shapes; exercises B/St/Sa padding + masking, the
    #             multi-step online-softmax KV tiling, and multiple batch blocks.
    B2, St2, Sa2 = 18, 10, 20
    text2 = 0.25 * jax.random.normal(keys[20], (B2, St2, Dt), dtype=jnp.float32)
    audio2 = 0.25 * jax.random.normal(keys[21], (B2, Sa2, Da), dtype=jnp.float32)
    out2 = multimodal_forward(text2, audio2, ca_params, head_params, block_sa=16)
    logits2 = jax.block_until_ready(out2["logits"])
    assert logits2.shape == (B2, n_classes), logits2.shape
    ref2 = reference_forward(text2, audio2, ca_params, head_params)
    assert jnp.allclose(logits2, ref2, rtol=2e-2, atol=2e-2), (logits2, ref2)

    print("KERNEL_OK")
</pallas_src>

<mosaic_0001>
module attributes {stable_mosaic.version = 11 : i64} {
  func.func @kernel(%arg0: i32, %arg1: i32, %arg2: memref<8x8x128xbf16, #tpu.memory_space<vmem>>, %arg3: memref<8x16x128xbf16, #tpu.memory_space<vmem>>, %arg4: memref<128x128xbf16, #tpu.memory_space<vmem>>, %arg5: memref<1x128xf32, #tpu.memory_space<vmem>>, %arg6: memref<128x128xbf16, #tpu.memory_space<vmem>>, %arg7: memref<1x128xf32, #tpu.memory_space<vmem>>, %arg8: memref<128x128xbf16, #tpu.memory_space<vmem>>, %arg9: memref<1x128xf32, #tpu.memory_space<vmem>>, %arg10: memref<128x128xbf16, #tpu.memory_space<vmem>>, %arg11: memref<1x128xf32, #tpu.memory_space<vmem>>, %arg12: memref<128x128xbf16, #tpu.memory_space<vmem>>, %arg13: memref<1x128xf32, #tpu.memory_space<vmem>>, %arg14: memref<128x128xbf16, #tpu.memory_space<vmem>>, %arg15: memref<1x128xf32, #tpu.memory_space<vmem>>, %arg16: memref<128x128xbf16, #tpu.memory_space<vmem>>, %arg17: memref<1x128xf32, #tpu.memory_space<vmem>>, %arg18: memref<128x128xbf16, #tpu.memory_space<vmem>>, %arg19: memref<1x128xf32, #tpu.memory_space<vmem>>, %arg20: memref<8x128xf32, #tpu.memory_space<vmem>>, %arg21: memref<8x8x128xbf16, #tpu.memory_space<vmem>>, %arg22: memref<8x8x1xf32, #tpu.memory_space<vmem>>, %arg23: memref<8x8x1xf32, #tpu.memory_space<vmem>>, %arg24: memref<8x8x128xf32, #tpu.memory_space<vmem>>) attributes {dimension_semantics = [#tpu.dimension_semantics<parallel>, #tpu.dimension_semantics<arbitrary>], iteration_bounds = array<i64: 1, 1>, scalar_prefetch = 0 : i64, scratch_operands = 4 : i64, tpu.core_type = #tpu.core_type<tc>, window_params = [{transform_indices = @transform_0, window_bounds = array<i64: 8, 8, 128>}, {transform_indices = @transform_1, window_bounds = array<i64: 8, 16, 128>}, {pipeline_mode = #tpu.pipeline_mode<synchronous>, transform_indices = @transform_2, window_bounds = array<i64: 128, 128>}, {pipeline_mode = #tpu.pipeline_mode<synchronous>, transform_indices = @transform_3, window_bounds = array<i64: 1, 128>}, {pipeline_mode = #tpu.pipeline_mode<synchronous>, transform_indices = @transform_4, window_bounds = array<i64: 128, 128>}, {pipeline_mode = #tpu.pipeline_mode<synchronous>, transform_indices = @transform_5, window_bounds = array<i64: 1, 128>}, {pipeline_mode = #tpu.pipeline_mode<synchronous>, transform_indices = @transform_6, window_bounds = array<i64: 128, 128>}, {pipeline_mode = #tpu.pipeline_mode<synchronous>, transform_indices = @transform_7, window_bounds = array<i64: 1, 128>}, {pipeline_mode = #tpu.pipeline_mode<synchronous>, transform_indices = @transform_8, window_bounds = array<i64: 128, 128>}, {pipeline_mode = #tpu.pipeline_mode<synchronous>, transform_indices = @transform_9, window_bounds = array<i64: 1, 128>}, {pipeline_mode = #tpu.pipeline_mode<synchronous>, transform_indices = @transform_10, window_bounds = array<i64: 128, 128>}, {pipeline_mode = #tpu.pipeline_mode<synchronous>, transform_indices = @transform_11, window_bounds = array<i64: 1, 128>}, {pipeline_mode = #tpu.pipeline_mode<synchronous>, transform_indices = @transform_12, window_bounds = array<i64: 128, 128>}, {pipeline_mode = #tpu.pipeline_mode<synchronous>, transform_indices = @transform_13, window_bounds = array<i64: 1, 128>}, {pipeline_mode = #tpu.pipeline_mode<synchronous>, transform_indices = @transform_14, window_bounds = array<i64: 128, 128>}, {pipeline_mode = #tpu.pipeline_mode<synchronous>, transform_indices = @transform_15, window_bounds = array<i64: 1, 128>}, {pipeline_mode = #tpu.pipeline_mode<synchronous>, transform_indices = @transform_16, window_bounds = array<i64: 128, 128>}, {pipeline_mode = #tpu.pipeline_mode<synchronous>, transform_indices = @transform_17, window_bounds = array<i64: 1, 128>}, {transform_indices = @transform_18, window_bounds = array<i64: 8, 128>}]} {
    %c0_i32 = arith.constant 0 : i32
    %0 = arith.cmpi eq, %arg1, %c0_i32 : i32
    %1 = arith.extui %0 : i1 to i32
    %c0_i32_0 = arith.constant 0 : i32
    %2 = arith.cmpi ne, %1, %c0_i32_0 : i32
    scf.if %2 {
      %c0_39 = arith.constant 0 : index
      %c0_40 = arith.constant 0 : index
      %c0_41 = arith.constant 0 : index
      %47 = vector.load %arg2[%c0_39, %c0_40, %c0_41] : memref<8x8x128xbf16, #tpu.memory_space<vmem>>, vector<8x8x128xbf16>
      %48 = vector.shape_cast %47 : vector<8x8x128xbf16> to vector<64x128xbf16>
      %c0_42 = arith.constant 0 : index
      %c0_43 = arith.constant 0 : index
      %49 = vector.load %arg4[%c0_42, %c0_43] : memref<128x128xbf16, #tpu.memory_space<vmem>>, vector<128x128xbf16>
      %cst_44 = arith.constant dense<0.000000e+00> : vector<64x128xf32>
      %50 = tpu.matmul %48, %49, %cst_44 {dimension_numbers = #tpu.dot_dimension_numbers<[1], [0], [0], [1], [0, 0, 1, 1], [], []>} : vector<64x128xbf16>, vector<128x128xbf16>, vector<64x128xf32> -> vector<64x128xf32>
      %c0_45 = arith.constant 0 : index
      %c0_46 = arith.constant 0 : index
      %51 = vector.load %arg5[%c0_45, %c0_46] : memref<1x128xf32, #tpu.memory_space<vmem>>, vector<1x128xf32>
      %52 = vector.broadcast %51 : vector<1x128xf32> to vector<64x128xf32>
      %53 = arith.addf %50, %52 : vector<64x128xf32>
      %54 = vector.shape_cast %53 : vector<64x128xf32> to vector<8x8x128xf32>
      %55 = arith.truncf %54 : vector<8x8x128xf32> to vector<8x8x128xbf16>
      %c0_47 = arith.constant 0 : index
      %c0_48 = arith.constant 0 : index
      %c0_49 = arith.constant 0 : index
      %56 = vector.load %arg21[%c0_47, %c0_48, %c0_49] : memref<8x8x128xbf16, #tpu.memory_space<vmem>>, vector<8x8x128xbf16>
      tpu.vector_store %arg21[%c0_47, %c0_48, %c0_49], %55 {strides = array<i32>} : memref<8x8x128xbf16, #tpu.memory_space<vmem>>, vector<8x8x128xbf16>,
      %cst_50 = arith.constant 0xFF800000 : f32
      %57 = vector.broadcast %cst_50 : f32 to vector<8x8x1xf32>
      %c0_51 = arith.constant 0 : index
      %c0_52 = arith.constant 0 : index
      %c0_53 = arith.constant 0 : index
      %58 = vector.load %arg22[%c0_51, %c0_52, %c0_53] : memref<8x8x1xf32, #tpu.memory_space<vmem>>, vector<8x8x1xf32>
      tpu.vector_store %arg22[%c0_51, %c0_52, %c0_53], %57 {strides = array<i32>} : memref<8x8x1xf32, #tpu.memory_space<vmem>>, vector<8x8x1xf32>,
      %cst_54 = arith.constant 0.000000e+00 : f32
      %59 = vector.broadcast %cst_54 : f32 to vector<8x8x1xf32>
      %c0_55 = arith.constant 0 : index
      %c0_56 = arith.constant 0 : index
      %c0_57 = arith.constant 0 : index
      %60 = vector.load %arg23[%c0_55, %c0_56, %c0_57] : memref<8x8x1xf32, #tpu.memory_space<vmem>>, vector<8x8x1xf32>
      tpu.vector_store %arg23[%c0_55, %c0_56, %c0_57], %59 {strides = array<i32>} : memref<8x8x1xf32, #tpu.memory_space<vmem>>, vector<8x8x1xf32>,
      %cst_58 = arith.constant 0.000000e+00 : f32
      %61 = vector.broadcast %cst_58 : f32 to vector<8x8x128xf32>
      %c0_59 = arith.constant 0 : index
      %c0_60 = arith.constant 0 : index
      %c0_61 = arith.constant 0 : index
      %62 = vector.load %arg24[%c0_59, %c0_60, %c0_61] : memref<8x8x128xf32, #tpu.memory_space<vmem>>, vector<8x8x128xf32>
      tpu.vector_store %arg24[%c0_59, %c0_60, %c0_61], %61 {strides = array<i32>} : memref<8x8x128xf32, #tpu.memory_space<vmem>>, vector<8x8x128xf32>,
    } else {
    }
    %c0 = arith.constant 0 : index
    %c0_1 = arith.constant 0 : index
    %c0_2 = arith.constant 0 : index
    %3 = vector.load %arg3[%c0, %c0_1, %c0_2] : memref<8x16x128xbf16, #tpu.memory_space<vmem>>, vector<8x16x128xbf16>
    %4 = vector.shape_cast %3 : vector<8x16x128xbf16> to vector<128x128xbf16>
    %c0_3 = arith.constant 0 : index
    %c0_4 = arith.constant 0 : index
    %5 = vector.load %arg6[%c0_3, %c0_4] : memref<128x128xbf16, #tpu.memory_space<vmem>>, vector<128x128xbf16>
    %cst = arith.constant dense<0.000000e+00> : vector<128x128xf32>
    %6 = tpu.matmul %4, %5, %cst {dimension_numbers = #tpu.dot_dimension_numbers<[1], [0], [0], [1], [0, 0, 1, 1], [], []>} : vector<128x128xbf16>, vector<128x128xbf16>, vector<128x128xf32> -> vector<128x128xf32>
    %c0_5 = arith.constant 0 : index
    %c0_6 = arith.constant 0 : index
    %7 = vector.load %arg7[%c0_5, %c0_6] : memref<1x128xf32, #tpu.memory_space<vmem>>, vector<1x128xf32>
    %8 = vector.broadcast %7 : vector<1x128xf32> to vector<128x128xf32>
    %9 = arith.addf %6, %8 : vector<128x128xf32>
    %10 = vector.shape_cast %9 : vector<128x128xf32> to vector<8x16x128xf32>
    %c0_7 = arith.constant 0 : index
    %c0_8 = arith.constant 0 : index
    %11 = vector.load %arg8[%c0_7, %c0_8] : memref<128x128xbf16, #tpu.memory_space<vmem>>, vector<128x128xbf16>
    %cst_9 = arith.constant dense<0.000000e+00> : vector<128x128xf32>
    %12 = tpu.matmul %4, %11, %cst_9 {dimension_numbers = #tpu.dot_dimension_numbers<[1], [0], [0], [1], [0, 0, 1, 1], [], []>} : vector<128x128xbf16>, vector<128x128xbf16>, vector<128x128xf32> -> vector<128x128xf32>
    %c0_10 = arith.constant 0 : index
    %c0_11 = arith.constant 0 : index
    %13 = vector.load %arg9[%c0_10, %c0_11] : memref<1x128xf32, #tpu.memory_space<vmem>>, vector<1x128xf32>
    %14 = vector.broadcast %13 : vector<1x128xf32> to vector<128x128xf32>
    %15 = arith.addf %12, %14 : vector<128x128xf32>
    %16 = vector.shape_cast %15 : vector<128x128xf32> to vector<8x16x128xf32>
    %c0_12 = arith.constant 0 : index
    %c0_13 = arith.constant 0 : index
    %c0_14 = arith.constant 0 : index
    %17 = vector.load %arg21[%c0_12, %c0_13, %c0_14] : memref<8x8x128xbf16, #tpu.memory_space<vmem>>, vector<8x8x128xbf16>
    %18 = arith.truncf %10 : vector<8x16x128xf32> to vector<8x16x128xbf16>
    %cst_15 = arith.constant dense<0.000000e+00> : vector<8x8x16xf32>
    %19 = tpu.matmul %17, %18, %cst_15 {dimension_numbers = #tpu.dot_dimension_numbers<[2], [2], [1], [1], [0, 0, 0, 1, 1, 1], [0], [0]>} : vector<8x8x128xbf16>, vector<8x16x128xbf16>, vector<8x8x16xf32> -> vector<8x8x16xf32>
    %c0_16 = arith.constant 0 : index
    %c0_17 = arith.constant 0 : index
    %c0_18 = arith.constant 0 : index
    %20 = vector.load %arg22[%c0_16, %c0_17, %c0_18] : memref<8x8x1xf32, #tpu.memory_space<vmem>>, vector<8x8x1xf32>
    %cst_19 = arith.constant dense<0xFF800000> : vector<8x8xf32>
    %21 = vector.multi_reduction <maximumf>, %19, %cst_19 [2] : vector<8x8x16xf32> to vector<8x8xf32>
    %22 = vector.shape_cast %21 : vector<8x8xf32> to vector<8x8x1xf32>
    %23 = arith.maximumf %20, %22 : vector<8x8x1xf32>
    %24 = arith.subf %20, %23 : vector<8x8x1xf32>
    %25 = math.exp %24 : vector<8x8x1xf32>
    %26 = vector.broadcast %23 : vector<8x8x1xf32> to vector<8x8x16xf32>
    %27 = arith.subf %19, %26 : vector<8x8x16xf32>
    %28 = math.exp %27 : vector<8x8x16xf32>
    %c0_20 = arith.constant 0 : index
    %c0_21 = arith.constant 0 : index
    %c0_22 = arith.constant 0 : index
    %29 = vector.load %arg23[%c0_20, %c0_21, %c0_22] : memref<8x8x1xf32, #tpu.memory_space<vmem>>, vector<8x8x1xf32>
    %30 = arith.mulf %25, %29 : vector<8x8x1xf32>
    %cst_23 = arith.constant dense<0.000000e+00> : vector<8x8xf32>
    %31 = vector.multi_reduction <add>, %28, %cst_23 [2] : vector<8x8x16xf32> to vector<8x8xf32>
    %32 = vector.shape_cast %31 : vector<8x8xf32> to vector<8x8x1xf32>
    %33 = arith.addf %30, %32 : vector<8x8x1xf32>
    %c0_24 = arith.constant 0 : index
    %c0_25 = arith.constant 0 : index
    %c0_26 = arith.constant 0 : index
    %34 = vector.load %arg23[%c0_24, %c0_25, %c0_26] : memref<8x8x1xf32, #tpu.memory_space<vmem>>, vector<8x8x1xf32>
    tpu.vector_store %arg23[%c0_24, %c0_25, %c0_26], %33 {strides = array<i32>} : memref<8x8x1xf32, #tpu.memory_space<vmem>>, vector<8x8x1xf32>,
    %c0_27 = arith.constant 0 : index
    %c0_28 = arith.constant 0 : index
    %c0_29 = arith.constant 0 : index
    %35 = vector.load %arg24[%c0_27, %c0_28, %c0_29] : memref<8x8x128xf32, #tpu.memory_space<vmem>>, vector<8x8x128xf32>
    %36 = vector.broadcast %25 : vector<8x8x1xf32> to vector<8x8x128xf32>
    %37 = arith.mulf %36, %35 : vector<8x8x128xf32>
    %38 = arith.truncf %28 : vector<8x8x16xf32> to vector<8x8x16xbf16>
    %39 = arith.truncf %16 : vector<8x16x128xf32> to vector<8x16x128xbf16>
    %cst_30 = arith.constant dense<0.000000e+00> : vector<8x8x128xf32>
    %40 = tpu.matmul %38, %39, %cst_30 {dimension_numbers = #tpu.dot_dimension_numbers<[2], [1], [1], [2], [0, 0, 0, 1, 1, 2], [0], [0]>} : vector<8x8x16xbf16>, vector<8x16x128xbf16>, vector<8x8x128xf32> -> vector<8x8x128xf32>
    %41 = arith.addf %37, %40 : vector<8x8x128xf32>
    %c0_31 = arith.constant 0 : index
    %c0_32 = arith.constant 0 : index
    %c0_33 = arith.constant 0 : index
    %42 = vector.load %arg24[%c0_31, %c0_32, %c0_33] : memref<8x8x128xf32, #tpu.memory_space<vmem>>, vector<8x8x128xf32>
    tpu.vector_store %arg24[%c0_31, %c0_32, %c0_33], %41 {strides = array<i32>} : memref<8x8x128xf32, #tpu.memory_space<vmem>>, vector<8x8x128xf32>,
    %c0_34 = arith.constant 0 : index
    %c0_35 = arith.constant 0 : index
    %c0_36 = arith.constant 0 : index
    %43 = vector.load %arg22[%c0_34, %c0_35, %c0_36] : memref<8x8x1xf32, #tpu.memory_space<vmem>>, vector<8x8x1xf32>
    tpu.vector_store %arg22[%c0_34, %c0_35, %c0_36], %23 {strides = array<i32>} : memref<8x8x1xf32, #tpu.memory_space<vmem>>, vector<8x8x1xf32>,
    %c0_i32_37 = arith.constant 0 : i32
    %44 = arith.cmpi eq, %arg1, %c0_i32_37 : i32
    %45 = arith.extui %44 : i1 to i32
    %c0_i32_38 = arith.constant 0 : i32
    %46 = arith.cmpi ne, %45, %c0_i32_38 : i32
    scf.if %46 {
      %c0_39 = arith.constant 0 : index
      %c0_40 = arith.constant 0 : index
      %c0_41 = arith.constant 0 : index
      %47 = vector.load %arg24[%c0_39, %c0_40, %c0_41] : memref<8x8x128xf32, #tpu.memory_space<vmem>>, vector<8x8x128xf32>
      %c0_42 = arith.constant 0 : index
      %c0_43 = arith.constant 0 : index
      %c0_44 = arith.constant 0 : index
      %48 = vector.load %arg23[%c0_42, %c0_43, %c0_44] : memref<8x8x1xf32, #tpu.memory_space<vmem>>, vector<8x8x1xf32>
      %49 = tpu.reciprocal %48 : vector<8x8x1xf32> -> vector<8x8x1xf32>
      %50 = vector.broadcast %49 : vector<8x8x1xf32> to vector<8x8x128xf32>
      %51 = arith.mulf %47, %50 : vector<8x8x128xf32>
      %cst_45 = arith.constant dense<0.000000e+00> : vector<8x128xf32>
      %52 = vector.multi_reduction <add>, %51, %cst_45 [1] : vector<8x8x128xf32> to vector<8x128xf32>
      %cst_46 = arith.constant 1.250000e-01 : f32
      %53 = vector.broadcast %cst_46 : f32 to vector<8x128xf32>
      %54 = arith.mulf %52, %53 : vector<8x128xf32>
      %55 = arith.truncf %54 : vector<8x128xf32> to vector<8x128xbf16>
      %c0_47 = arith.constant 0 : index
      %c0_48 = arith.constant 0 : index
      %56 = vector.load %arg10[%c0_47, %c0_48] : memref<128x128xbf16, #tpu.memory_space<vmem>>, vector<128x128xbf16>
      %cst_49 = arith.constant dense<0.000000e+00> : vector<8x128xf32>
      %57 = tpu.matmul %55, %56, %cst_49 {dimension_numbers = #tpu.dot_dimension_numbers<[1], [0], [0], [1], [0, 0, 1, 1], [], []>} : vector<8x128xbf16>, vector<128x128xbf16>, vector<8x128xf32> -> vector<8x128xf32>
      %c0_50 = arith.constant 0 : index
      %c0_51 = arith.constant 0 : index
      %58 = vector.load %arg11[%c0_50, %c0_51] : memref<1x128xf32, #tpu.memory_space<vmem>>, vector<1x128xf32>
      %59 = vector.broadcast %58 : vector<1x128xf32> to vector<8x128xf32>
      %60 = arith.addf %57, %59 : vector<8x128xf32>
      %cst_52 = arith.constant 0.000000e+00 : f32
      %61 = vector.broadcast %cst_52 : f32 to vector<8x128xf32>
      %62 = arith.maximumf %60, %61 : vector<8x128xf32>
      %63 = arith.truncf %62 : vector<8x128xf32> to vector<8x128xbf16>
      %c0_53 = arith.constant 0 : index
      %c0_54 = arith.constant 0 : index
      %64 = vector.load %arg12[%c0_53, %c0_54] : memref<128x128xbf16, #tpu.memory_space<vmem>>, vector<128x128xbf16>
      %cst_55 = arith.constant dense<0.000000e+00> : vector<8x128xf32>
      %65 = tpu.matmul %63, %64, %cst_55 {dimension_numbers = #tpu.dot_dimension_numbers<[1], [0], [0], [1], [0, 0, 1, 1], [], []>} : vector<8x128xbf16>, vector<128x128xbf16>, vector<8x128xf32> -> vector<8x128xf32>
      %c0_56 = arith.constant 0 : index
      %c0_57 = arith.constant 0 : index
      %66 = vector.load %arg13[%c0_56, %c0_57] : memref<1x128xf32, #tpu.memory_space<vmem>>, vector<1x128xf32>
      %67 = vector.broadcast %66 : vector<1x128xf32> to vector<8x128xf32>
      %68 = arith.addf %65, %67 : vector<8x128xf32>
      %cst_58 = arith.constant 0.000000e+00 : f32
      %69 = vector.broadcast %cst_58 : f32 to vector<8x128xf32>
      %70 = arith.maximumf %68, %69 : vector<8x128xf32>
      %71 = arith.truncf %70 : vector<8x128xf32> to vector<8x128xbf16>
      %c0_59 = arith.constant 0 : index
      %c0_60 = arith.constant 0 : index
      %72 = vector.load %arg14[%c0_59, %c0_60] : memref<128x128xbf16, #tpu.memory_space<vmem>>, vector<128x128xbf16>
      %cst_61 = arith.constant dense<0.000000e+00> : vector<8x128xf32>
      %73 = tpu.matmul %71, %72, %cst_61 {dimension_numbers = #tpu.dot_dimension_numbers<[1], [0], [0], [1], [0, 0, 1, 1], [], []>} : vector<8x128xbf16>, vector<128x128xbf16>, vector<8x128xf32> -> vector<8x128xf32>
      %c0_62 = arith.constant 0 : index
      %c0_63 = arith.constant 0 : index
      %74 = vector.load %arg15[%c0_62, %c0_63] : memref<1x128xf32, #tpu.memory_space<vmem>>, vector<1x128xf32>
      %75 = vector.broadcast %74 : vector<1x128xf32> to vector<8x128xf32>
      %76 = arith.addf %73, %75 : vector<8x128xf32>
      %cst_64 = arith.constant 0.000000e+00 : f32
      %77 = vector.broadcast %cst_64 : f32 to vector<8x128xf32>
      %78 = arith.maximumf %76, %77 : vector<8x128xf32>
      %79 = arith.truncf %78 : vector<8x128xf32> to vector<8x128xbf16>
      %c0_65 = arith.constant 0 : index
      %c0_66 = arith.constant 0 : index
      %80 = vector.load %arg16[%c0_65, %c0_66] : memref<128x128xbf16, #tpu.memory_space<vmem>>, vector<128x128xbf16>
      %cst_67 = arith.constant dense<0.000000e+00> : vector<8x128xf32>
      %81 = tpu.matmul %79, %80, %cst_67 {dimension_numbers = #tpu.dot_dimension_numbers<[1], [0], [0], [1], [0, 0, 1, 1], [], []>} : vector<8x128xbf16>, vector<128x128xbf16>, vector<8x128xf32> -> vector<8x128xf32>
      %c0_68 = arith.constant 0 : index
      %c0_69 = arith.constant 0 : index
      %82 = vector.load %arg17[%c0_68, %c0_69] : memref<1x128xf32, #tpu.memory_space<vmem>>, vector<1x128xf32>
      %83 = vector.broadcast %82 : vector<1x128xf32> to vector<8x128xf32>
      %84 = arith.addf %81, %83 : vector<8x128xf32>
      %cst_70 = arith.constant 0.000000e+00 : f32
      %85 = vector.broadcast %cst_70 : f32 to vector<8x128xf32>
      %86 = arith.maximumf %84, %85 : vector<8x128xf32>
      %87 = arith.truncf %86 : vector<8x128xf32> to vector<8x128xbf16>
      %c0_71 = arith.constant 0 : index
      %c0_72 = arith.constant 0 : index
      %88 = vector.load %arg18[%c0_71, %c0_72] : memref<128x128xbf16, #tpu.memory_space<vmem>>, vector<128x128xbf16>
      %cst_73 = arith.constant dense<0.000000e+00> : vector<8x128xf32>
      %89 = tpu.matmul %87, %88, %cst_73 {dimension_numbers = #tpu.dot_dimension_numbers<[1], [0], [0], [1], [0, 0, 1, 1], [], []>} : vector<8x128xbf16>, vector<128x128xbf16>, vector<8x128xf32> -> vector<8x128xf32>
      %c0_74 = arith.constant 0 : index
      %c0_75 = arith.constant 0 : index
      %90 = vector.load %arg19[%c0_74, %c0_75] : memref<1x128xf32, #tpu.memory_space<vmem>>, vector<1x128xf32>
      %91 = vector.broadcast %90 : vector<1x128xf32> to vector<8x128xf32>
      %92 = arith.addf %89, %91 : vector<8x128xf32>
      %c0_76 = arith.constant 0 : index
      %c0_77 = arith.constant 0 : index
      %93 = vector.load %arg20[%c0_76, %c0_77] : memref<8x128xf32, #tpu.memory_space<vmem>>, vector<8x128xf32>
      tpu.vector_store %arg20[%c0_76, %c0_77], %92 {strides = array<i32>} : memref<8x128xf32, #tpu.memory_space<vmem>>, vector<8x128xf32>,
    } else {
    }
    return
  }
  func.func @transform_0(%arg0: i32, %arg1: i32) -> (i32, i32, i32) {
    %c0_i32 = arith.constant 0 : i32
    %c0_i32_0 = arith.constant 0 : i32
    %c0_i32_1 = arith.constant 0 : i32
    return %arg0, %c0_i32, %c0_i32_0 : i32, i32, i32
  }
  func.func @transform_1(%arg0: i32, %arg1: i32) -> (i32, i32, i32) {
    %c0_i32 = arith.constant 0 : i32
    %c0_i32_0 = arith.constant 0 : i32
    return %arg0, %arg1, %c0_i32 : i32, i32, i32
  }
  func.func @transform_2(%arg0: i32, %arg1: i32) -> (i32, i32) {
    %c0_i32 = arith.constant 0 : i32
    %c0_i32_0 = arith.constant 0 : i32
    %c0_i32_1 = arith.constant 0 : i32
    return %c0_i32, %c0_i32_0 : i32, i32
  }
  func.func @transform_3(%arg0: i32, %arg1: i32) -> (i32, i32) {
    %c0_i32 = arith.constant 0 : i32
    %c0_i32_0 = arith.constant 0 : i32
    %c0_i32_1 = arith.constant 0 : i32
    return %c0_i32, %c0_i32_0 : i32, i32
  }
  func.func @transform_4(%arg0: i32, %arg1: i32) -> (i32, i32) {
    %c0_i32 = arith.constant 0 : i32
    %c0_i32_0 = arith.constant 0 : i32
    %c0_i32_1 = arith.constant 0 : i32
    return %c0_i32, %c0_i32_0 : i32, i32
  }
  func.func @transform_5(%arg0: i32, %arg1: i32) -> (i32, i32) {
    %c0_i32 = arith.constant 0 : i32
    %c0_i32_0 = arith.constant 0 : i32
    %c0_i32_1 = arith.constant 0 : i32
    return %c0_i32, %c0_i32_0 : i32, i32
  }
  func.func @transform_6(%arg0: i32, %arg1: i32) -> (i32, i32) {
    %c0_i32 = arith.constant 0 : i32
    %c0_i32_0 = arith.constant 0 : i32
    %c0_i32_1 = arith.constant 0 : i32
    return %c0_i32, %c0_i32_0 : i32, i32
  }
  func.func @transform_7(%arg0: i32, %arg1: i32) -> (i32, i32) {
    %c0_i32 = arith.constant 0 : i32
    %c0_i32_0 = arith.constant 0 : i32
    %c0_i32_1 = arith.constant 0 : i32
    return %c0_i32, %c0_i32_0 : i32, i32
  }
  func.func @transform_8(%arg0: i32, %arg1: i32) -> (i32, i32) {
    %c0_i32 = arith.constant 0 : i32
    %c0_i32_0 = arith.constant 0 : i32
    %c0_i32_1 = arith.constant 0 : i32
    return %c0_i32, %c0_i32_0 : i32, i32
  }
  func.func @transform_9(%arg0: i32, %arg1: i32) -> (i32, i32) {
    %c0_i32 = arith.constant 0 : i32
    %c0_i32_0 = arith.constant 0 : i32
    %c0_i32_1 = arith.constant 0 : i32
    return %c0_i32, %c0_i32_0 : i32, i32
  }
  func.func @transform_10(%arg0: i32, %arg1: i32) -> (i32, i32) {
    %c0_i32 = arith.constant 0 : i32
    %c0_i32_0 = arith.constant 0 : i32
    %c0_i32_1 = arith.constant 0 : i32
    return %c0_i32, %c0_i32_0 : i32, i32
  }
  func.func @transform_11(%arg0: i32, %arg1: i32) -> (i32, i32) {
    %c0_i32 = arith.constant 0 : i32
    %c0_i32_0 = arith.constant 0 : i32
    %c0_i32_1 = arith.constant 0 : i32
    return %c0_i32, %c0_i32_0 : i32, i32
  }
  func.func @transform_12(%arg0: i32, %arg1: i32) -> (i32, i32) {
    %c0_i32 = arith.constant 0 : i32
    %c0_i32_0 = arith.constant 0 : i32
    %c0_i32_1 = arith.constant 0 : i32
    return %c0_i32, %c0_i32_0 : i32, i32
  }
  func.func @transform_13(%arg0: i32, %arg1: i32) -> (i32, i32) {
    %c0_i32 = arith.constant 0 : i32
    %c0_i32_0 = arith.constant 0 : i32
    %c0_i32_1 = arith.constant 0 : i32
    return %c0_i32, %c0_i32_0 : i32, i32
  }
  func.func @transform_14(%arg0: i32, %arg1: i32) -> (i32, i32) {
    %c0_i32 = arith.constant 0 : i32
    %c0_i32_0 = arith.constant 0 : i32
    %c0_i32_1 = arith.constant 0 : i32
    return %c0_i32, %c0_i32_0 : i32, i32
  }
  func.func @transform_15(%arg0: i32, %arg1: i32) -> (i32, i32) {
    %c0_i32 = arith.constant 0 : i32
    %c0_i32_0 = arith.constant 0 : i32
    %c0_i32_1 = arith.constant 0 : i32
    return %c0_i32, %c0_i32_0 : i32, i32
  }
  func.func @transform_16(%arg0: i32, %arg1: i32) -> (i32, i32) {
    %c0_i32 = arith.constant 0 : i32
    %c0_i32_0 = arith.constant 0 : i32
    %c0_i32_1 = arith.constant 0 : i32
    return %c0_i32, %c0_i32_0 : i32, i32
  }
  func.func @transform_17(%arg0: i32, %arg1: i32) -> (i32, i32) {
    %c0_i32 = arith.constant 0 : i32
    %c0_i32_0 = arith.constant 0 : i32
    %c0_i32_1 = arith.constant 0 : i32
    return %c0_i32, %c0_i32_0 : i32, i32
  }
  func.func @transform_18(%arg0: i32, %arg1: i32) -> (i32, i32) {
    %c0_i32 = arith.constant 0 : i32
    %c0_i32_0 = arith.constant 0 : i32
    return %arg0, %c0_i32 : i32, i32
  }
}

</mosaic_0001>

<llo_original>
// kernel: tpu_custom_call.1
$region0: #{tpu_custom_call.1}
  #allocation0 [shape = 'u32[]', space=smem, size = 0x4, offset = 0x4, fixed_abs, tag = 'smem constant byte address 0x4 - core index']
  #allocation1 [shape = 'u32[144,128]{1,0:T(1,128)}', space=vmem, size = 0x12000, scoped, tag = 'internal scratch']
  #allocation2 [shape = 'bf16[8,8,128]{2,1,0:T(8,128)(2,1)}', space=vmem, size = 0x4000, scoped, tag = 'scratch operand']
  #allocation3 [shape = 'f32[8,8,1]{2,1,0:T(8,128)}', space=vmem, size = 0x8000, scoped, tag = 'scratch operand']
  #allocation4 [shape = 'f32[8,8,1]{2,1,0:T(8,128)}', space=vmem, size = 0x8000, scoped, tag = 'scratch operand']
  #allocation5 [shape = 'f32[8,8,128]{2,1,0:T(8,128)}', space=vmem, size = 0x8000, scoped, tag = 'scratch operand']
  %s0 = inlined_call_operand.hbm [shape: bf16[8,8,128], index: 0, kind: input, shape index: {}]
  %s1 = inlined_call_operand.hbm [shape: bf16[8,16,128], index: 1, kind: input, shape index: {}]
  %s2 = inlined_call_operand.hbm [shape: bf16[128,128], index: 2, kind: input, shape index: {}]
  %s3 = inlined_call_operand.vmem [shape: f32[1,128], index: 3, kind: input, shape index: {}]
  %s4 = inlined_call_operand.hbm [shape: bf16[128,128], index: 4, kind: input, shape index: {}]
  %s5 = inlined_call_operand.vmem [shape: f32[1,128], index: 5, kind: input, shape index: {}]
  %s6 = inlined_call_operand.hbm [shape: bf16[128,128], index: 6, kind: input, shape index: {}]
  %s7 = inlined_call_operand.vmem [shape: f32[1,128], index: 7, kind: input, shape index: {}]
  %s8 = inlined_call_operand.hbm [shape: bf16[128,128], index: 8, kind: input, shape index: {}]
  %s9 = inlined_call_operand.vmem [shape: f32[1,128], index: 9, kind: input, shape index: {}]
  %s10 = inlined_call_operand.hbm [shape: bf16[128,128], index: 10, kind: input, shape index: {}]
  %s11 = inlined_call_operand.vmem [shape: f32[1,128], index: 11, kind: input, shape index: {}]
  %s12 = inlined_call_operand.hbm [shape: bf16[128,128], index: 12, kind: input, shape index: {}]
  %s13 = inlined_call_operand.vmem [shape: f32[1,128], index: 13, kind: input, shape index: {}]
  %s14 = inlined_call_operand.hbm [shape: bf16[128,128], index: 14, kind: input, shape index: {}]
  %s15 = inlined_call_operand.vmem [shape: f32[1,128], index: 15, kind: input, shape index: {}]
  %s16 = inlined_call_operand.hbm [shape: bf16[128,128], index: 16, kind: input, shape index: {}]
  %s17 = inlined_call_operand.vmem [shape: f32[1,128], index: 17, kind: input, shape index: {}]
  %s18 = inlined_call_operand.hbm [shape: f32[8,128], index: 18, kind: output, shape index: {}]
  %s19 = sld [smem:[#allocation0]]
  $region130: #{tpu_custom_call.1} parent=0
    _
  %s21 = ssub.s32 1, %s19
  %s22 = scalar_select 0, %s21, %s19
  $region1: #{tpu_custom_call.1} parent=0
    #allocation6 [shape = 'u8[16384]{0}', space=vmem, size = 0x4000, scoped, tag = 'input window, operand 0, single buffered']
    #allocation7 [shape = 's32[1]{0}', space=sflag, size = 0x4, scoped, tag = 'scoped memory for tpu_custom_call.1']
    #allocation8 [shape = 's32[1]{0}', space=sflag, size = 0x4, scoped, tag = 'scoped memory for tpu_custom_call.1']
    #allocation9 [shape = 'u8[32768]{0}', space=vmem, size = 0x8000, scoped, tag = 'input window, operand 1, single buffered']
    #allocation10 [shape = 's32[1]{0}', space=sflag, size = 0x4, scoped, tag = 'scoped memory for tpu_custom_call.1']
    #allocation11 [shape = 'u8[32768]{0}', space=vmem, size = 0x8000, scoped, tag = 'input window, operand 2, single buffered']
    #allocation12 [shape = 'u8[32768]{0}', space=vmem, size = 0x8000, scoped, tag = 'input window, operand 4, single buffered']
    #allocation13 [shape = 's32[1]{0}', space=sflag, size = 0x4, scoped, tag = 'scoped memory for tpu_custom_call.1']
    #allocation14 [shape = 'u8[32768]{0}', space=vmem, size = 0x8000, scoped, tag = 'input window, operand 6, single buffered']
    #allocation15 [shape = 'u8[32768]{0}', space=vmem, size = 0x8000, scoped, tag = 'input window, operand 8, single buffered']
    #allocation16 [shape = 's32[1]{0}', space=sflag, size = 0x4, scoped, tag = 'scoped memory for tpu_custom_call.1']
    #allocation17 [shape = 'u8[32768]{0}', space=vmem, size = 0x8000, scoped, tag = 'input window, operand 10, single buffered']
    #allocation18 [shape = 'u8[32768]{0}', space=vmem, size = 0x8000, scoped, tag = 'input window, operand 12, single buffered']
    #allocation19 [shape = 's32[1]{0}', space=sflag, size = 0x4, scoped, tag = 'scoped memory for tpu_custom_call.1']
    #allocation20 [shape = 'u8[32768]{0}', space=vmem, size = 0x8000, scoped, tag = 'input window, operand 14, single buffered']
    #allocation21 [shape = 'u8[32768]{0}', space=vmem, size = 0x8000, scoped, tag = 'input window, operand 16, single buffered']
    #allocation22 [shape = 's32[1]{0}', space=sflag, size = 0x4, scoped, tag = 'scoped memory for tpu_custom_call.1']
    #allocation23 [shape = 'u8[4096]{0}', space=vmem, size = 0x1000, scoped, tag = 'output window, operand 0, single buffered']
    %23 = vsyncpa [#allocation7], 0
    %24 = vsyncpa [#allocation10], 0
    %25 = vsyncpa [#allocation13], 0
    %26 = vsyncpa [#allocation16], 0
    %27 = vsyncpa [#allocation19], 0
    %28 = vsyncpa [#allocation22], 0
    %29 = vsyncpa [#allocation8], 0
    // Predicated region
    $region2: #{tpu_custom_call.1} parent=1 // pred_check
      _
    $region3: #{tpu_custom_call.1} parent=1 // pred_check_branch
      %31 = sbr.rel (0) target = $region5
    $region4: #{tpu_custom_call.1} parent=1 // pred_region
      %s33 = ssub.s32 512, 512
      %34 = vsyncadd [#allocation7], %s33
      %s35 = sshll.u32 [#allocation6], 4
      %s36 = int_to_ptr.vmem [resolvable:$true] %s35
      %41 = dma.hbm_to_vmem [thread:$0]  %s0, 512, %s36, [#allocation7], 64, 64, 4
    $region5: #{tpu_custom_call.1} parent=1 // pred_fallthru
      _
    // Predicated region
    $region6: #{tpu_custom_call.1} parent=1 // pred_check
      _
    $region7: #{tpu_custom_call.1} parent=1 // pred_check_branch
      %43 = sbr.rel (0) target = $region9
    $region8: #{tpu_custom_call.1} parent=1 // pred_region
      %s45 = ssub.s32 1024, 1024
      %46 = vsyncadd [#allocation10], %s45
      %s47 = sshll.u32 [#allocation9], 4
      %s48 = int_to_ptr.vmem [resolvable:$true] %s47
      %53 = dma.hbm_to_vmem [thread:$0]  %s1, 1024, %s48, [#allocation10], 64, 64, 4
    $region9: #{tpu_custom_call.1} parent=1 // pred_fallthru
      _
    // Predicated region
    $region10: #{tpu_custom_call.1} parent=1 // pred_check
      _
    $region11: #{tpu_custom_call.1} parent=1 // pred_check_branch
      %55 = sbr.rel (0) target = $region13
    $region12: #{tpu_custom_call.1} parent=1 // pred_region
      %s57 = ssub.s32 1024, 1024
      %58 = vsyncadd [#allocation10], %s57
      %s59 = sshll.u32 [#allocation11], 4
      %s60 = int_to_ptr.vmem [resolvable:$true] %s59
      %65 = dma.hbm_to_vmem [thread:$0]  %s2, 1024, %s60, [#allocation10], 64, 64, 4
    $region13: #{tpu_custom_call.1} parent=1 // pred_fallthru
      _
    // Predicated region
    $region14: #{tpu_custom_call.1} parent=1 // pred_check
      _
    $region15: #{tpu_custom_call.1} parent=1 // pred_check_branch
      %67 = sbr.rel (0) target = $region17
    $region16: #{tpu_custom_call.1} parent=1 // pred_region
      _
    $region17: #{tpu_custom_call.1} parent=1 // pred_fallthru
      _
    // Predicated region
    $region18: #{tpu_custom_call.1} parent=1 // pred_check
      _
    $region19: #{tpu_custom_call.1} parent=1 // pred_check_branch
      %69 = sbr.rel (0) target = $region21
    $region20: #{tpu_custom_call.1} parent=1 // pred_region
      %s71 = ssub.s32 1024, 1024
      %72 = vsyncadd [#allocation13], %s71
      %s73 = sshll.u32 [#allocation12], 4
      %s74 = int_to_ptr.vmem [resolvable:$true] %s73
      %79 = dma.hbm_to_vmem [thread:$0]  %s4, 1024, %s74, [#allocation13], 64, 64, 4
    $region21: #{tpu_custom_call.1} parent=1 // pred_fallthru
      _
    // Predicated region
    $region22: #{tpu_custom_call.1} parent=1 // pred_check
      _
    $region23: #{tpu_custom_call.1} parent=1 // pred_check_branch
      %81 = sbr.rel (0) target = $region25
    $region24: #{tpu_custom_call.1} parent=1 // pred_region
      _
    $region25: #{tpu_custom_call.1} parent=1 // pred_fallthru
      _
    // Predicated region
    $region26: #{tpu_custom_call.1} parent=1 // pred_check
      _
    $region27: #{tpu_custom_call.1} parent=1 // pred_check_branch
      %83 = sbr.rel (0) target = $region29
    $region28: #{tpu_custom_call.1} parent=1 // pred_region
      %s85 = ssub.s32 1024, 1024
      %86 = vsyncadd [#allocation13], %s85
      %s87 = sshll.u32 [#allocation14], 4
      %s88 = int_to_ptr.vmem [resolvable:$true] %s87
      %93 = dma.hbm_to_vmem [thread:$0]  %s6, 1024, %s88, [#allocation13], 64, 64, 4
    $region29: #{tpu_custom_call.1} parent=1 // pred_fallthru
      _
    // Predicated region
    $region30: #{tpu_custom_call.1} parent=1 // pred_check
      _
    $region31: #{tpu_custom_call.1} parent=1 // pred_check_branch
      %95 = sbr.rel (0) target = $region33
    $region32: #{tpu_custom_call.1} parent=1 // pred_region
      _
    $region33: #{tpu_custom_call.1} parent=1 // pred_fallthru
      _
    // Predicated region
    $region34: #{tpu_custom_call.1} parent=1 // pred_check
      _
    $region35: #{tpu_custom_call.1} parent=1 // pred_check_branch
      %97 = sbr.rel (0) target = $region37
    $region36: #{tpu_custom_call.1} parent=1 // pred_region
      %s99 = ssub.s32 1024, 1024
      %100 = vsyncadd [#allocation16], %s99
      %s101 = sshll.u32 [#allocation15], 4
      %s102 = int_to_ptr.vmem [resolvable:$true] %s101
      %107 = dma.hbm_to_vmem [thread:$0]  %s8, 1024, %s102, [#allocation16], 64, 64, 4
    $region37: #{tpu_custom_call.1} parent=1 // pred_fallthru
      _
    // Predicated region
    $region38: #{tpu_custom_call.1} parent=1 // pred_check
      _
    $region39: #{tpu_custom_call.1} parent=1 // pred_check_branch
      %109 = sbr.rel (0) target = $region41
    $region40: #{tpu_custom_call.1} parent=1 // pred_region
      _
    $region41: #{tpu_custom_call.1} parent=1 // pred_fallthru
      _
    // Predicated region
    $region42: #{tpu_custom_call.1} parent=1 // pred_check
      _
    $region43: #{tpu_custom_call.1} parent=1 // pred_check_branch
      %111 = sbr.rel (0) target = $region45
    $region44: #{tpu_custom_call.1} parent=1 // pred_region
      %s113 = ssub.s32 1024, 1024
      %114 = vsyncadd [#allocation16], %s113
      %s115 = sshll.u32 [#allocation17], 4
      %s116 = int_to_ptr.vmem [resolvable:$true] %s115
      %121 = dma.hbm_to_vmem [thread:$0]  %s10, 1024, %s116, [#allocation16], 64, 64, 4
    $region45: #{tpu_custom_call.1} parent=1 // pred_fallthru
      _
    // Predicated region
    $region46: #{tpu_custom_call.1} parent=1 // pred_check
      _
    $region47: #{tpu_custom_call.1} parent=1 // pred_check_branch
      %123 = sbr.rel (0) target = $region49
    $region48: #{tpu_custom_call.1} parent=1 // pred_region
      _
    $region49: #{tpu_custom_call.1} parent=1 // pred_fallthru
      _
    // Predicated region
    $region50: #{tpu_custom_call.1} parent=1 // pred_check
      _
    $region51: #{tpu_custom_call.1} parent=1 // pred_check_branch
      %125 = sbr.rel (0) target = $region53
    $region52: #{tpu_custom_call.1} parent=1 // pred_region
      %s127 = ssub.s32 1024, 1024
      %128 = vsyncadd [#allocation19], %s127
      %s129 = sshll.u32 [#allocation18], 4
      %s130 = int_to_ptr.vmem [resolvable:$true] %s129
      %135 = dma.hbm_to_vmem [thread:$0]  %s12, 1024, %s130, [#allocation19], 64, 64, 4
    $region53: #{tpu_custom_call.1} parent=1 // pred_fallthru
      _
    // Predicated region
    $region54: #{tpu_custom_call.1} parent=1 // pred_check
      _
    $region55: #{tpu_custom_call.1} parent=1 // pred_check_branch
      %137 = sbr.rel (0) target = $region57
    $region56: #{tpu_custom_call.1} parent=1 // pred_region
      _
    $region57: #{tpu_custom_call.1} parent=1 // pred_fallthru
      _
    // Predicated region
    $region58: #{tpu_custom_call.1} parent=1 // pred_check
      _
    $region59: #{tpu_custom_call.1} parent=1 // pred_check_branch
      %139 = sbr.rel (0) target = $region61
    $region60: #{tpu_custom_call.1} parent=1 // pred_region
      %s141 = ssub.s32 1024, 1024
      %142 = vsyncadd [#allocation19], %s141
      %s143 = sshll.u32 [#allocation20], 4
      %s144 = int_to_ptr.vmem [resolvable:$true] %s143
      %149 = dma.hbm_to_vmem [thread:$0]  %s14, 1024, %s144, [#allocation19], 64, 64, 4
    $region61: #{tpu_custom_call.1} parent=1 // pred_fallthru
      _
    // Predicated region
    $region62: #{tpu_custom_call.1} parent=1 // pred_check
      _
    $region63: #{tpu_custom_call.1} parent=1 // pred_check_branch
      %151 = sbr.rel (0) target = $region65
    $region64: #{tpu_custom_call.1} parent=1 // pred_region
      _
    $region65: #{tpu_custom_call.1} parent=1 // pred_fallthru
      _
    // Predicated region
    $region66: #{tpu_custom_call.1} parent=1 // pred_check
      _
    $region67: #{tpu_custom_call.1} parent=1 // pred_check_branch
      %153 = sbr.rel (0) target = $region69
    $region68: #{tpu_custom_call.1} parent=1 // pred_region
      %s155 = ssub.s32 1024, 1024
      %156 = vsyncadd [#allocation22], %s155
      %s157 = sshll.u32 [#allocation21], 4
      %s158 = int_to_ptr.vmem [resolvable:$true] %s157
      %163 = dma.hbm_to_vmem [thread:$0]  %s16, 1024, %s158, [#allocation22], 64, 64, 4
    $region69: #{tpu_custom_call.1} parent=1 // pred_fallthru
      _
    // Predicated region
    $region70: #{tpu_custom_call.1} parent=1 // pred_check
      _
    $region71: #{tpu_custom_call.1} parent=1 // pred_check_branch
      %165 = sbr.rel (0) target = $region73
    $region72: #{tpu_custom_call.1} parent=1 // pred_region
      _
    $region73: #{tpu_custom_call.1} parent=1 // pred_fallthru
      _
    // Predicated region
    $region74: #{tpu_custom_call.1} parent=1 // pred_check
      _
    $region75: #{tpu_custom_call.1} parent=1 // pred_check_branch
      %167 = sbr.rel (0) target = $region77
    $region76: #{tpu_custom_call.1} parent=1 // pred_region
      %168 = dma.done [#allocation7], 512
    $region77: #{tpu_custom_call.1} parent=1 // pred_fallthru
      _
    // Predicated region
    $region78: #{tpu_custom_call.1} parent=1 // pred_check
      _
    $region79: #{tpu_custom_call.1} parent=1 // pred_check_branch
      %170 = sbr.rel (0) target = $region81
    $region80: #{tpu_custom_call.1} parent=1 // pred_region
      %171 = dma.done [#allocation10], 1024
    $region81: #{tpu_custom_call.1} parent=1 // pred_fallthru
      _
    // Predicated region
    $region82: #{tpu_custom_call.1} parent=1 // pred_check
      _
    $region83: #{tpu_custom_call.1} parent=1 // pred_check_branch
      %173 = sbr.rel (0) target = $region85
    $region84: #{tpu_custom_call.1} parent=1 // pred_region
      %174 = dma.done [#allocation10], 1024
    $region85: #{tpu_custom_call.1} parent=1 // pred_fallthru
      _
    // Predicated region
    $region86: #{tpu_custom_call.1} parent=1 // pred_check
      _
    $region87: #{tpu_custom_call.1} parent=1 // pred_check_branch
      %176 = sbr.rel (0) target = $region89
    $region88: #{tpu_custom_call.1} parent=1 // pred_region
      %177 = dma.done [#allocation13], 1024
    $region89: #{tpu_custom_call.1} parent=1 // pred_fallthru
      _
    // Predicated region
    $region90: #{tpu_custom_call.1} parent=1 // pred_check
      _
    $region91: #{tpu_custom_call.1} parent=1 // pred_check_branch
      %179 = sbr.rel (0) target = $region93
    $region92: #{tpu_custom_call.1} parent=1 // pred_region
      %180 = dma.done [#allocation13], 1024
    $region93: #{tpu_custom_call.1} parent=1 // pred_fallthru
      _
    // Predicated region
    $region94: #{tpu_custom_call.1} parent=1 // pred_check
      _
    $region95: #{tpu_custom_call.1} parent=1 // pred_check_branch
      %182 = sbr.rel (0) target = $region97
    $region96: #{tpu_custom_call.1} parent=1 // pred_region
      %183 = dma.done [#allocation16], 1024
    $region97: #{tpu_custom_call.1} parent=1 // pred_fallthru
      _
    // Predicated region
    $region98: #{tpu_custom_call.1} parent=1 // pred_check
      _
    $region99: #{tpu_custom_call.1} parent=1 // pred_check_branch
      %185 = sbr.rel (0) target = $region101
    $region100: #{tpu_custom_call.1} parent=1 // pred_region
      %186 = dma.done [#allocation16], 1024
    $region101: #{tpu_custom_call.1} parent=1 // pred_fallthru
      _
    // Predicated region
    $region102: #{tpu_custom_call.1} parent=1 // pred_check
      _
    $region103: #{tpu_custom_call.1} parent=1 // pred_check_branch
      %188 = sbr.rel (0) target = $region105
    $region104: #{tpu_custom_call.1} parent=1 // pred_region
      %189 = dma.done [#allocation19], 1024
    $region105: #{tpu_custom_call.1} parent=1 // pred_fallthru
      _
    // Predicated region
    $region106: #{tpu_custom_call.1} parent=1 // pred_check
      _
    $region107: #{tpu_custom_call.1} parent=1 // pred_check_branch
      %191 = sbr.rel (0) target = $region109
    $region108: #{tpu_custom_call.1} parent=1 // pred_region
      %192 = dma.done [#allocation19], 1024
    $region109: #{tpu_custom_call.1} parent=1 // pred_fallthru
      _
    // Predicated region
    $region110: #{tpu_custom_call.1} parent=1 // pred_check
      _
    $region111: #{tpu_custom_call.1} parent=1 // pred_check_branch
      %194 = sbr.rel (0) target = $region113
    $region112: #{tpu_custom_call.1} parent=1 // pred_region
      %195 = dma.done [#allocation22], 1024
    $region113: #{tpu_custom_call.1} parent=1 // pred_fallthru
      _
    %p197 = scmp.eq.s32.totalorder 0, 0
    // Predicated region
    $region114: #{tpu_custom_call.1} parent=1 // pred_check
      %p198 = pneg %p197
    $region115: #{tpu_custom_call.1} parent=1 // pred_check_branch
      %200 = sbr.rel (%p198) target = $region117
    $region116: #{tpu_custom_call.1} parent=1 // pred_region
      %v201 = vld [vmem:[#allocation6] sm:$0xf]
      %v202 = vld [vmem:[#allocation6 + $0x4] sm:$0xf]
      %v203 = vld [vmem:[#allocation6 + $0x8] sm:$0xf]
      %v204 = vld [vmem:[#allocation6 + $0xc] sm:$0xf]
      %v205 = vld [vmem:[#allocation6 + $0x10] sm:$0xf]
      %v206 = vld [vmem:[#allocation6 + $0x14] sm:$0xf]
      %v207 = vld [vmem:[#allocation6 + $0x18] sm:$0xf]
      %v208 = vld [vmem:[#allocation6 + $0x1c] sm:$0xf]
      %v209 = vld [vmem:[#allocation11] sm:$0xf]
      %v210 = vld [vmem:[#allocation11 + $0x4] sm:$0xf]
      %v211 = vld [vmem:[#allocation11 + $0x8] sm:$0xf]
      %v212 = vld [vmem:[#allocation11 + $0xc] sm:$0xf]
      %v213 = vld [vmem:[#allocation11 + $0x10] sm:$0xf]
      %v214 = vld [vmem:[#allocation11 + $0x14] sm:$0xf]
      %v215 = vld [vmem:[#allocation11 + $0x18] sm:$0xf]
      %v216 = vld [vmem:[#allocation11 + $0x1c] sm:$0xf]
      %v217 = vld [vmem:[#allocation11 + $0x20] sm:$0xf]
      %v218 = vld [vmem:[#allocation11 + $0x24] sm:$0xf]
      %v219 = vld [vmem:[#allocation11 + $0x28] sm:$0xf]
      %v220 = vld [vmem:[#allocation11 + $0x2c] sm:$0xf]
      %v221 = vld [vmem:[#allocation11 + $0x30] sm:$0xf]
      %v222 = vld [vmem:[#allocation11 + $0x34] sm:$0xf]
      %v223 = vld [vmem:[#allocation11 + $0x38] sm:$0xf]
      %v224 = vld [vmem:[#allocation11 + $0x3c] sm:$0xf]
      %v225 = vld [vmem:[%s3] sm:$0x1]
      %v227 = vlaneseq
      %v228 = vshrl.u32 %v227, 7
      %v229 = vsub.s32 0, %v228
      %v230 = vrot.slane %v225, %v229
      %v240 = vunpack.c.l.b16 %v201
      %v241 = vunpack.c.l.b16 %v202
      %v242 = vunpack.c.l.b16 %v203
      %v243 = vunpack.c.l.b16 %v204
      %v244 = vunpack.c.l.b16 %v205
      %v245 = vunpack.c.l.b16 %v206
      %v246 = vunpack.c.l.b16 %v207
      %v247 = vunpack.c.l.b16 %v208
      %v248 = vpack.c.b16 %v241, %v240
      %v249 = vpack.c.b16 %v243, %v242
      %v250 = vpack.c.b16 %v245, %v244
      %v251 = vpack.c.b16 %v247, %v246
      %v272 = vunpack.c.l.b16 %v209
      %v273 = vunpack.c.l.b16 %v210
      %v274 = vunpack.c.l.b16 %v211
      %v275 = vunpack.c.l.b16 %v212
      %v276 = vunpack.c.l.b16 %v213
      %v277 = vunpack.c.l.b16 %v214
      %v278 = vunpack.c.l.b16 %v215
      %v279 = vunpack.c.l.b16 %v216
      %v280 = vunpack.c.l.b16 %v217
      %v281 = vunpack.c.l.b16 %v218
      %v282 = vunpack.c.l.b16 %v219
      %v283 = vunpack.c.l.b16 %v220
      %v284 = vunpack.c.l.b16 %v221
      %v285 = vunpack.c.l.b16 %v222
      %v286 = vunpack.c.l.b16 %v223
      %v287 = vunpack.c.l.b16 %v224
      %v288 = vpack.c.b16 %v273, %v272
      %v289 = vpack.c.b16 %v275, %v274
      %v290 = vpack.c.b16 %v277, %v276
      %v291 = vpack.c.b16 %v279, %v278
      %v292 = vpack.c.b16 %v281, %v280
      %v293 = vpack.c.b16 %v283, %v282
      %v294 = vpack.c.b16 %v285, %v284
      %v295 = vpack.c.b16 %v287, %v286
      %304 = vmatprep.subr.bf16.mxu0 0
      %305 = vmatpush1.bf16.msra.mxu0 %v288
      %306 = vmatprep.subr.bf16.mxu0 0
      %307 = vmatpush1.bf16.msra.mxu0 %v289
      %308 = vmatprep.subr.bf16.mxu0 0
      %309 = vmatpush1.bf16.msra.mxu0 %v290
      %310 = vmatprep.subr.bf16.mxu0 0
      %311 = vmatpush1.bf16.msra.mxu0 %v291
      %312 = vmatprep.subr.bf16.mxu0 0
      %313 = vmatpush1.bf16.msra.mxu0 %v292
      %314 = vmatprep.subr.bf16.mxu0 0
      %315 = vmatpush1.bf16.msra.mxu0 %v293
      %316 = vmatprep.subr.bf16.mxu0 0
      %317 = vmatpush1.bf16.msra.mxu0 %v294
      %318 = vmatprep.subr.bf16.mxu0 0
      %319 = vmatpush1.bf16.msra.mxu0 %v295
      %320 = vmatprep.subr.bf16.mxu0 0
      %321 = vmatpush1.bf16.msra.mxu0 0
      %322 = vmatprep.subr.bf16.mxu0 0
      %323 = vmatpush1.bf16.msra.mxu0 0
      %324 = vmatprep.subr.bf16.mxu0 0
      %325 = vmatpush1.bf16.msra.mxu0 0
      %326 = vmatprep.subr.bf16.mxu0 0
      %327 = vmatpush1.bf16.msra.mxu0 0
      %328 = vmatprep.subr.bf16.mxu0 0
      %329 = vmatpush1.bf16.msra.mxu0 0
      %330 = vmatprep.subr.bf16.mxu0 0
      %331 = vmatpush1.bf16.msra.mxu0 0
      %332 = vmatprep.subr.bf16.mxu0 0
      %333 = vmatpush1.bf16.msra.mxu0 0
      %334 = vmatprep.subr.bf16.mxu0 0
      %335 = vmatpush1.bf16.msra.mxu0 0
      %336 = vmatprep.mubr.bf16.mxu0 0
      %337 = vmatmul.mubr.bf16.gmra.mrb[0].mxu0 %v248
      %v338 = vpop.f32.mrb[0].mxu0
      %v339 = vadd.f32 %v230, %v338
      %v340 = vpop.f32.mrb[0].mxu0
      %v341 = vpop.f32.mrb[0].mxu0
      %v342 = vadd.f32 %v230, %v341
      %v343 = vpop.f32.mrb[0].mxu0
      %344 = vmatprep.mubr.bf16.mxu0 0
      %345 = vmatmul.mubr.bf16.gmra.mrb[0].mxu0 %v249
      %v346 = vpop.f32.mrb[0].mxu0
      %v347 = vadd.f32 %v230, %v346
      %v348 = vpop.f32.mrb[0].mxu0
      %v349 = vpop.f32.mrb[0].mxu0
      %v350 = vadd.f32 %v230, %v349
      %v351 = vpop.f32.mrb[0].mxu0
      %352 = vmatprep.mubr.bf16.mxu0 0
      %353 = vmatmul.mubr.bf16.gmra.mrb[0].mxu0 %v250
      %v354 = vpop.f32.mrb[0].mxu0
      %v355 = vadd.f32 %v230, %v354
      %v356 = vpop.f32.mrb[0].mxu0
      %v357 = vpop.f32.mrb[0].mxu0
      %v358 = vadd.f32 %v230, %v357
      %v359 = vpop.f32.mrb[0].mxu0
      %360 = vmatprep.mubr.bf16.mxu0 0
      %361 = vmatmul.mubr.bf16.gmra.mrb[0].mxu0 %v251
      %v362 = vpop.f32.mrb[0].mxu0
      %v363 = vadd.f32 %v230, %v362
      %v364 = vpop.f32.mrb[0].mxu0
      %v365 = vpop.f32.mrb[0].mxu0
      %v366 = vadd.f32 %v230, %v365
      %v367 = vpop.f32.mrb[0].mxu0
      %368 = vdwg.mxu0
      %v369 = vpack.c.bf16 %v339, %v339
      %v370 = vpack.c.bf16 %v342, %v342
      %v371 = vpack.c.bf16 %v347, %v347
      %v372 = vpack.c.bf16 %v350, %v350
      %v373 = vpack.c.bf16 %v355, %v355
      %v374 = vpack.c.bf16 %v358, %v358
      %v375 = vpack.c.bf16 %v363, %v363
      %v376 = vpack.c.bf16 %v366, %v366
      %377 = vst [vmem:[#allocation2] sm:$0xf] %v369
      %378 = vst [vmem:[#allocation2 + $0x4] sm:$0xf] %v370
      %379 = vst [vmem:[#allocation2 + $0x8] sm:$0xf] %v371
      %380 = vst [vmem:[#allocation2 + $0xc] sm:$0xf] %v372
      %381 = vst [vmem:[#allocation2 + $0x10] sm:$0xf] %v373
      %382 = vst [vmem:[#allocation2 + $0x14] sm:$0xf] %v374
      %383 = vst [vmem:[#allocation2 + $0x18] sm:$0xf] %v375
      %384 = vst [vmem:[#allocation2 + $0x1c] sm:$0xf] %v376
      %vm385 = vcmask 7168
      %386 = vst.msk [vmem:[#allocation3] sm:$0xff] %vm385, -inf
      %387 = vst.msk [vmem:[#allocation3 + $0x8] sm:$0xff] %vm385, -inf
      %388 = vst.msk [vmem:[#allocation3 + $0x10] sm:$0xff] %vm385, -inf
      %389 = vst.msk [vmem:[#allocation3 + $0x18] sm:$0xff] %vm385, -inf
      %390 = vst.msk [vmem:[#allocation3 + $0x20] sm:$0xff] %vm385, -inf
      %391 = vst.msk [vmem:[#allocation3 + $0x28] sm:$0xff] %vm385, -inf
      %392 = vst.msk [vmem:[#allocation3 + $0x30] sm:$0xff] %vm385, -inf
      %393 = vst.msk [vmem:[#allocation3 + $0x38] sm:$0xff] %vm385, -inf
      %394 = vst.msk [vmem:[#allocation4] sm:$0xff] %vm385, 0.0
      %395 = vst.msk [vmem:[#allocation4 + $0x8] sm:$0xff] %vm385, 0.0
      %396 = vst.msk [vmem:[#allocation4 + $0x10] sm:$0xff] %vm385, 0.0
      %397 = vst.msk [vmem:[#allocation4 + $0x18] sm:$0xff] %vm385, 0.0
      %398 = vst.msk [vmem:[#allocation4 + $0x20] sm:$0xff] %vm385, 0.0
      %399 = vst.msk [vmem:[#allocation4 + $0x28] sm:$0xff] %vm385, 0.0
      %400 = vst.msk [vmem:[#allocation4 + $0x30] sm:$0xff] %vm385, 0.0
      %401 = vst.msk [vmem:[#allocation4 + $0x38] sm:$0xff] %vm385, 0.0
      %402 = vst [vmem:[#allocation5] sm:$0xff] 0.0
      %403 = vst [vmem:[#allocation5 + $0x8] sm:$0xff] 0.0
      %404 = vst [vmem:[#allocation5 + $0x10] sm:$0xff] 0.0
      %405 = vst [vmem:[#allocation5 + $0x18] sm:$0xff] 0.0
      %406 = vst [vmem:[#allocation5 + $0x20] sm:$0xff] 0.0
      %407 = vst [vmem:[#allocation5 + $0x28] sm:$0xff] 0.0
      %408 = vst [vmem:[#allocation5 + $0x30] sm:$0xff] 0.0
      %409 = vst [vmem:[#allocation5 + $0x38] sm:$0xff] 0.0
    $region117: #{tpu_custom_call.1} parent=1 // pred_fallthru
      _
    %v410 = vld [vmem:[#allocation9] sm:$0xf]
    %v411 = vld [vmem:[#allocation9 + $0x4] sm:$0xf]
    %v412 = vld [vmem:[#allocation9 + $0x8] sm:$0xf]
    %v413 = vld [vmem:[#allocation9 + $0xc] sm:$0xf]
    %v414 = vld [vmem:[#allocation9 + $0x10] sm:$0xf]
    %v415 = vld [vmem:[#allocation9 + $0x14] sm:$0xf]
    %v416 = vld [vmem:[#allocation9 + $0x18] sm:$0xf]
    %v417 = vld [vmem:[#allocation9 + $0x1c] sm:$0xf]
    %v418 = vld [vmem:[#allocation9 + $0x20] sm:$0xf]
    %v419 = vld [vmem:[#allocation9 + $0x24] sm:$0xf]
    %v420 = vld [vmem:[#allocation9 + $0x28] sm:$0xf]
    %v421 = vld [vmem:[#allocation9 + $0x2c] sm:$0xf]
    %v422 = vld [vmem:[#allocation9 + $0x30] sm:$0xf]
    %v423 = vld [vmem:[#allocation9 + $0x34] sm:$0xf]
    %v424 = vld [vmem:[#allocation9 + $0x38] sm:$0xf]
    %v425 = vld [vmem:[#allocation9 + $0x3c] sm:$0xf]
    %v426 = vld [vmem:[#allocation12] sm:$0xf]
    %v427 = vld [vmem:[#allocation12 + $0x4] sm:$0xf]
    %v428 = vld [vmem:[#allocation12 + $0x8] sm:$0xf]
    %v429 = vld [vmem:[#allocation12 + $0xc] sm:$0xf]
    %v430 = vld [vmem:[#allocation12 + $0x10] sm:$0xf]
    %v431 = vld [vmem:[#allocation12 + $0x14] sm:$0xf]
    %v432 = vld [vmem:[#allocation12 + $0x18] sm:$0xf]
    %v433 = vld [vmem:[#allocation12 + $0x1c] sm:$0xf]
    %v434 = vld [vmem:[#allocation12 + $0x20] sm:$0xf]
    %v435 = vld [vmem:[#allocation12 + $0x24] sm:$0xf]
    %v436 = vld [vmem:[#allocation12 + $0x28] sm:$0xf]
    %v437 = vld [vmem:[#allocation12 + $0x2c] sm:$0xf]
    %v438 = vld [vmem:[#allocation12 + $0x30] sm:$0xf]
    %v439 = vld [vmem:[#allocation12 + $0x34] sm:$0xf]
    %v440 = vld [vmem:[#allocation12 + $0x38] sm:$0xf]
    %v441 = vld [vmem:[#allocation12 + $0x3c] sm:$0xf]
    %v442 = vld [vmem:[%s5] sm:$0x1]
    %v444 = vlaneseq
    %v445 = vshrl.u32 %v444, 7
    %v446 = vsub.s32 0, %v445
    %v447 = vrot.slane %v442, %v446
    %v465 = vunpack.c.l.b16 %v410
    %v466 = vunpack.c.l.b16 %v411
    %v467 = vunpack.c.l.b16 %v412
    %v468 = vunpack.c.l.b16 %v413
    %v469 = vunpack.c.l.b16 %v414
    %v470 = vunpack.c.l.b16 %v415
    %v471 = vunpack.c.l.b16 %v416
    %v472 = vunpack.c.l.b16 %v417
    %v473 = vunpack.c.l.b16 %v418
    %v474 = vunpack.c.l.b16 %v419
    %v475 = vunpack.c.l.b16 %v420
    %v476 = vunpack.c.l.b16 %v421
    %v477 = vunpack.c.l.b16 %v422
    %v478 = vunpack.c.l.b16 %v423
    %v479 = vunpack.c.l.b16 %v424
    %v480 = vunpack.c.l.b16 %v425
    %v481 = vpack.c.b16 %v466, %v465
    %v482 = vpack.c.b16 %v468, %v467
    %v483 = vpack.c.b16 %v470, %v469
    %v484 = vpack.c.b16 %v472, %v471
    %v485 = vpack.c.b16 %v474, %v473
    %v486 = vpack.c.b16 %v476, %v475
    %v487 = vpack.c.b16 %v478, %v477
    %v488 = vpack.c.b16 %v480, %v479
    %v513 = vunpack.c.l.b16 %v426
    %v514 = vunpack.c.l.b16 %v427
    %v515 = vunpack.c.l.b16 %v428
    %v516 = vunpack.c.l.b16 %v429
    %v517 = vunpack.c.l.b16 %v430
    %v518 = vunpack.c.l.b16 %v431
    %v519 = vunpack.c.l.b16 %v432
    %v520 = vunpack.c.l.b16 %v433
    %v521 = vunpack.c.l.b16 %v434
    %v522 = vunpack.c.l.b16 %v435
    %v523 = vunpack.c.l.b16 %v436
    %v524 = vunpack.c.l.b16 %v437
    %v525 = vunpack.c.l.b16 %v438
    %v526 = vunpack.c.l.b16 %v439
    %v527 = vunpack.c.l.b16 %v440
    %v528 = vunpack.c.l.b16 %v441
    %v529 = vpack.c.b16 %v514, %v513
    %v530 = vpack.c.b16 %v516, %v515
    %v531 = vpack.c.b16 %v518, %v517
    %v532 = vpack.c.b16 %v520, %v519
    %v533 = vpack.c.b16 %v522, %v521
    %v534 = vpack.c.b16 %v524, %v523
    %v535 = vpack.c.b16 %v526, %v525
    %v536 = vpack.c.b16 %v528, %v527
    %545 = vmatprep.subr.bf16.mxu0 0
    %546 = vmatpush1.bf16.msra.mxu0 %v529
    %547 = vmatprep.subr.bf16.mxu0 0
    %548 = vmatpush1.bf16.msra.mxu0 %v530
    %549 = vmatprep.subr.bf16.mxu0 0
    %550 = vmatpush1.bf16.msra.mxu0 %v531
    %551 = vmatprep.subr.bf16.mxu0 0
    %552 = vmatpush1.bf16.msra.mxu0 %v532
    %553 = vmatprep.subr.bf16.mxu0 0
    %554 = vmatpush1.bf16.msra.mxu0 %v533
    %555 = vmatprep.subr.bf16.mxu0 0
    %556 = vmatpush1.bf16.msra.mxu0 %v534
    %557 = vmatprep.subr.bf16.mxu0 0
    %558 = vmatpush1.bf16.msra.mxu0 %v535
    %559 = vmatprep.subr.bf16.mxu0 0
    %560 = vmatpush1.bf16.msra.mxu0 %v536
    %561 = vmatprep.subr.bf16.mxu0 0
    %562 = vmatpush1.bf16.msra.mxu0 0
    %563 = vmatprep.subr.bf16.mxu0 0
    %564 = vmatpush1.bf16.msra.mxu0 0
    %565 = vmatprep.subr.bf16.mxu0 0
    %566 = vmatpush1.bf16.msra.mxu0 0
    %567 = vmatprep.subr.bf16.mxu0 0
    %568 = vmatpush1.bf16.msra.mxu0 0
    %569 = vmatprep.subr.bf16.mxu0 0
    %570 = vmatpush1.bf16.msra.mxu0 0
    %571 = vmatprep.subr.bf16.mxu0 0
    %572 = vmatpush1.bf16.msra.mxu0 0
    %573 = vmatprep.subr.bf16.mxu0 0
    %574 = vmatpush1.bf16.msra.mxu0 0
    %575 = vmatprep.subr.bf16.mxu0 0
    %576 = vmatpush1.bf16.msra.mxu0 0
    %577 = vmatprep.mubr.bf16.mxu0 0
    %578 = vmatmul.mubr.bf16.gmra.mrb[0].mxu0 %v481
    %v579 = vpop.f32.mrb[0].mxu0
    %v580 = vadd.f32 %v447, %v579
    %v581 = vpop.f32.mrb[0].mxu0
    %v582 = vpop.f32.mrb[0].mxu0
    %v583 = vadd.f32 %v447, %v582
    %v584 = vpop.f32.mrb[0].mxu0
    %585 = vmatprep.mubr.bf16.mxu0 0
    %586 = vmatmul.mubr.bf16.gmra.mrb[0].mxu0 %v482
    %v587 = vpop.f32.mrb[0].mxu0
    %v588 = vadd.f32 %v447, %v587
    %v589 = vpop.f32.mrb[0].mxu0
    %v590 = vpop.f32.mrb[0].mxu0
    %v591 = vadd.f32 %v447, %v590
    %v592 = vpop.f32.mrb[0].mxu0
    %593 = vmatprep.mubr.bf16.mxu0 0
    %594 = vmatmul.mubr.bf16.gmra.mrb[0].mxu0 %v483
    %v595 = vpop.f32.mrb[0].mxu0
    %v596 = vadd.f32 %v447, %v595
    %v597 = vpop.f32.mrb[0].mxu0
    %v598 = vpop.f32.mrb[0].mxu0
    %v599 = vadd.f32 %v447, %v598
    %v600 = vpop.f32.mrb[0].mxu0
    %601 = vmatprep.mubr.bf16.mxu0 0
    %602 = vmatmul.mubr.bf16.gmra.mrb[0].mxu0 %v484
    %v603 = vpop.f32.mrb[0].mxu0
    %v604 = vadd.f32 %v447, %v603
    %v605 = vpop.f32.mrb[0].mxu0
    %v606 = vpop.f32.mrb[0].mxu0
    %v607 = vadd.f32 %v447, %v606
    %v608 = vpop.f32.mrb[0].mxu0
    %609 = vmatprep.mubr.bf16.mxu0 0
    %610 = vmatmul.mubr.bf16.gmra.mrb[0].mxu0 %v485
    %v611 = vpop.f32.mrb[0].mxu0
    %v612 = vadd.f32 %v447, %v611
    %v613 = vpop.f32.mrb[0].mxu0
    %v614 = vpop.f32.mrb[0].mxu0
    %v615 = vadd.f32 %v447, %v614
    %v616 = vpop.f32.mrb[0].mxu0
    %617 = vmatprep.mubr.bf16.mxu0 0
    %618 = vmatmul.mubr.bf16.gmra.mrb[0].mxu0 %v486
    %v619 = vpop.f32.mrb[0].mxu0
    %v620 = vadd.f32 %v447, %v619
    %v621 = vpop.f32.mrb[0].mxu0
    %v622 = vpop.f32.mrb[0].mxu0
    %v623 = vadd.f32 %v447, %v622
    %v624 = vpop.f32.mrb[0].mxu0
    %625 = vmatprep.mubr.bf16.mxu0 0
    %626 = vmatmul.mubr.bf16.gmra.mrb[0].mxu0 %v487
    %v627 = vpop.f32.mrb[0].mxu0
    %v628 = vadd.f32 %v447, %v627
    %v629 = vpop.f32.mrb[0].mxu0
    %v630 = vpop.f32.mrb[0].mxu0
    %v631 = vadd.f32 %v447, %v630
    %v632 = vpop.f32.mrb[0].mxu0
    %633 = vmatprep.mubr.bf16.mxu0 0
    %634 = vmatmul.mubr.bf16.gmra.mrb[0].mxu0 %v488
    %v635 = vpop.f32.mrb[0].mxu0
    %v636 = vadd.f32 %v447, %v635
    %v637 = vpop.f32.mrb[0].mxu0
    %v638 = vpop.f32.mrb[0].mxu0
    %v639 = vadd.f32 %v447, %v638
    %v640 = vpop.f32.mrb[0].mxu0
    %641 = vdwg.mxu0
    %v642 = vld [vmem:[#allocation14] sm:$0xf]
    %v643 = vld [vmem:[#allocation14 + $0x4] sm:$0xf]
    %v644 = vld [vmem:[#allocation14 + $0x8] sm:$0xf]
    %v645 = vld [vmem:[#allocation14 + $0xc] sm:$0xf]
    %v646 = vld [vmem:[#allocation14 + $0x10] sm:$0xf]
    %v647 = vld [vmem:[#allocation14 + $0x14] sm:$0xf]
    %v648 = vld [vmem:[#allocation14 + $0x18] sm:$0xf]
    %v649 = vld [vmem:[#allocation14 + $0x1c] sm:$0xf]
    %v650 = vld [vmem:[#allocation14 + $0x20] sm:$0xf]
    %v651 = vld [vmem:[#allocation14 + $0x24] sm:$0xf]
    %v652 = vld [vmem:[#allocation14 + $0x28] sm:$0xf]
    %v653 = vld [vmem:[#allocation14 + $0x2c] sm:$0xf]
    %v654 = vld [vmem:[#allocation14 + $0x30] sm:$0xf]
    %v655 = vld [vmem:[#allocation14 + $0x34] sm:$0xf]
    %v656 = vld [vmem:[#allocation14 + $0x38] sm:$0xf]
    %v657 = vld [vmem:[#allocation14 + $0x3c] sm:$0xf]
    %v658 = vld [vmem:[%s7] sm:$0x1]
    %v660 = vlaneseq
    %v661 = vshrl.u32 %v660, 7
    %v662 = vsub.s32 0, %v661
    %v663 = vrot.slane %v658, %v662
    %v681 = vunpack.c.l.b16 %v642
    %v682 = vunpack.c.l.b16 %v643
    %v683 = vunpack.c.l.b16 %v644
    %v684 = vunpack.c.l.b16 %v645
    %v685 = vunpack.c.l.b16 %v646
    %v686 = vunpack.c.l.b16 %v647
    %v687 = vunpack.c.l.b16 %v648
    %v688 = vunpack.c.l.b16 %v649
    %v689 = vunpack.c.l.b16 %v650
    %v690 = vunpack.c.l.b16 %v651
    %v691 = vunpack.c.l.b16 %v652
    %v692 = vunpack.c.l.b16 %v653
    %v693 = vunpack.c.l.b16 %v654
    %v694 = vunpack.c.l.b16 %v655
    %v695 = vunpack.c.l.b16 %v656
    %v696 = vunpack.c.l.b16 %v657
    %v697 = vpack.c.b16 %v682, %v681
    %v698 = vpack.c.b16 %v684, %v683
    %v699 = vpack.c.b16 %v686, %v685
    %v700 = vpack.c.b16 %v688, %v687
    %v701 = vpack.c.b16 %v690, %v689
    %v702 = vpack.c.b16 %v692, %v691
    %v703 = vpack.c.b16 %v694, %v693
    %v704 = vpack.c.b16 %v696, %v695
    %713 = vmatprep.subr.bf16.mxu0 0
    %714 = vmatpush1.bf16.msra.mxu0 %v697
    %715 = vmatprep.subr.bf16.mxu0 0
    %716 = vmatpush1.bf16.msra.mxu0 %v698
    %717 = vmatprep.subr.bf16.mxu0 0
    %718 = vmatpush1.bf16.msra.mxu0 %v699
    %719 = vmatprep.subr.bf16.mxu0 0
    %720 = vmatpush1.bf16.msra.mxu0 %v700
    %721 = vmatprep.subr.bf16.mxu0 0
    %722 = vmatpush1.bf16.msra.mxu0 %v701
    %723 = vmatprep.subr.bf16.mxu0 0
    %724 = vmatpush1.bf16.msra.mxu0 %v702
    %725 = vmatprep.subr.bf16.mxu0 0
    %726 = vmatpush1.bf16.msra.mxu0 %v703
    %727 = vmatprep.subr.bf16.mxu0 0
    %728 = vmatpush1.bf16.msra.mxu0 %v704
    %729 = vmatprep.subr.bf16.mxu0 0
    %730 = vmatpush1.bf16.msra.mxu0 0
    %731 = vmatprep.subr.bf16.mxu0 0
    %732 = vmatpush1.bf16.msra.mxu0 0
    %733 = vmatprep.subr.bf16.mxu0 0
    %734 = vmatpush1.bf16.msra.mxu0 0
    %735 = vmatprep.subr.bf16.mxu0 0
    %736 = vmatpush1.bf16.msra.mxu0 0
    %737 = vmatprep.subr.bf16.mxu0 0
    %738 = vmatpush1.bf16.msra.mxu0 0
    %739 = vmatprep.subr.bf16.mxu0 0
    %740 = vmatpush1.bf16.msra.mxu0 0
    %741 = vmatprep.subr.bf16.mxu0 0
    %742 = vmatpush1.bf16.msra.mxu0 0
    %743 = vmatprep.subr.bf16.mxu0 0
    %744 = vmatpush1.bf16.msra.mxu0 0
    %745 = vmatprep.mubr.bf16.mxu0 0
    %746 = vmatmul.mubr.bf16.gmra.mrb[0].mxu0 %v481
    %v747 = vpop.f32.mrb[0].mxu0
    %v748 = vadd.f32 %v663, %v747
    %v749 = vpop.f32.mrb[0].mxu0
    %v750 = vpop.f32.mrb[0].mxu0
    %v751 = vadd.f32 %v663, %v750
    %v752 = vpop.f32.mrb[0].mxu0
    %753 = vmatprep.mubr.bf16.mxu0 0
    %754 = vmatmul.mubr.bf16.gmra.mrb[0].mxu0 %v482
    %v755 = vpop.f32.mrb[0].mxu0
    %v756 = vadd.f32 %v663, %v755
    %v757 = vpop.f32.mrb[0].mxu0
    %v758 = vpop.f32.mrb[0].mxu0
    %v759 = vadd.f32 %v663, %v758
    %v760 = vpop.f32.mrb[0].mxu0
    %761 = vmatprep.mubr.bf16.mxu0 0
    %762 = vmatmul.mubr.bf16.gmra.mrb[0].mxu0 %v483
    %v763 = vpop.f32.mrb[0].mxu0
    %v764 = vadd.f32 %v663, %v763
    %v765 = vpop.f32.mrb[0].mxu0
    %v766 = vpop.f32.mrb[0].mxu0
    %v767 = vadd.f32 %v663, %v766
    %v768 = vpop.f32.mrb[0].mxu0
    %769 = vmatprep.mubr.bf16.mxu0 0
    %770 = vmatmul.mubr.bf16.gmra.mrb[0].mxu0 %v484
    %v771 = vpop.f32.mrb[0].mxu0
    %v772 = vadd.f32 %v663, %v771
    %v773 = vpop.f32.mrb[0].mxu0
    %v774 = vpop.f32.mrb[0].mxu0
    %v775 = vadd.f32 %v663, %v774
    %v776 = vpop.f32.mrb[0].mxu0
    %777 = vmatprep.mubr.bf16.mxu0 0
    %778 = vmatmul.mubr.bf16.gmra.mrb[0].mxu0 %v485
    %v779 = vpop.f32.mrb[0].mxu0
    %v780 = vadd.f32 %v663, %v779
    %v781 = vpop.f32.mrb[0].mxu0
    %v782 = vpop.f32.mrb[0].mxu0
    %v783 = vadd.f32 %v663, %v782
    %v784 = vpop.f32.mrb[0].mxu0
    %785 = vmatprep.mubr.bf16.mxu0 0
    %786 = vmatmul.mubr.bf16.gmra.mrb[0].mxu0 %v486
    %v787 = vpop.f32.mrb[0].mxu0
    %v788 = vadd.f32 %v663, %v787
    %v789 = vpop.f32.mrb[0].mxu0
    %v790 = vpop.f32.mrb[0].mxu0
    %v791 = vadd.f32 %v663, %v790
    %v792 = vpop.f32.mrb[0].mxu0
    %793 = vmatprep.mubr.bf16.mxu0 0
    %794 = vmatmul.mubr.bf16.gmra.mrb[0].mxu0 %v487
    %v795 = vpop.f32.mrb[0].mxu0
    %v796 = vadd.f32 %v663, %v795
    %v797 = vpop.f32.mrb[0].mxu0
    %v798 = vpop.f32.mrb[0].mxu0
    %v799 = vadd.f32 %v663, %v798
    %v800 = vpop.f32.mrb[0].mxu0
    %801 = vmatprep.mubr.bf16.mxu0 0
    %802 = vmatmul.mubr.bf16.gmra.mrb[0].mxu0 %v488
    %v803 = vpop.f32.mrb[0].mxu0
    %v804 = vadd.f32 %v663, %v803
    %v805 = vpop.f32.mrb[0].mxu0
    %v806 = vpop.f32.mrb[0].mxu0
    %v807 = vadd.f32 %v663, %v806
    %v808 = vpop.f32.mrb[0].mxu0
    %809 = vdwg.mxu0
    %v810 = vld [vmem:[#allocation2] sm:$0xf]
    %v811 = vld [vmem:[#allocation2 + $0x4] sm:$0xf]
    %v812 = vld [vmem:[#allocation2 + $0x8] sm:$0xf]
    %v813 = vld [vmem:[#allocation2 + $0xc] sm:$0xf]
    %v814 = vld [vmem:[#allocation2 + $0x10] sm:$0xf]
    %v815 = vld [vmem:[#allocation2 + $0x14] sm:$0xf]
    %v816 = vld [vmem:[#allocation2 + $0x18] sm:$0xf]
    %v817 = vld [vmem:[#allocation2 + $0x1c] sm:$0xf]
    %v818 = vpack.c.bf16 %v583, %v580
    %v819 = vpack.c.bf16 %v591, %v588
    %v820 = vpack.c.bf16 %v599, %v596
    %v821 = vpack.c.bf16 %v607, %v604
    %v822 = vpack.c.bf16 %v615, %v612
    %v823 = vpack.c.bf16 %v623, %v620
    %v824 = vpack.c.bf16 %v631, %v628
    %v825 = vpack.c.bf16 %v639, %v636
    %826 = vmatprep.subr.bf16.mxu0 0
    %827 = vmatpush1.bf16.xpose.msra.mxu0 %v818
    %828 = vmatprep.subr.bf16.mxu0 0
    %829 = vmatpush1.bf16.xpose.msra.mxu0 0
    %830 = vmatprep.subr.bf16.mxu0 0
    %831 = vmatpush1.bf16.xpose.msra.mxu0 0
    %832 = vmatprep.subr.bf16.mxu0 0
    %833 = vmatpush1.bf16.xpose.msra.mxu0 0
    %834 = vmatprep.subr.bf16.mxu0 0
    %835 = vmatpush1.bf16.xpose.msra.mxu0 0
    %836 = vmatprep.subr.bf16.mxu0 0
    %837 = vmatpush1.bf16.xpose.msra.mxu0 0
    %838 = vmatprep.subr.bf16.mxu0 0
    %839 = vmatpush1.bf16.xpose.msra.mxu0 0
    %840 = vmatprep.subr.bf16.mxu0 0
    %841 = vmatpush1.bf16.xpose.msra.mxu0 0
    %842 = vmatprep.subr.bf16.mxu0 0
    %843 = vmatpush1.bf16.xpose.msra.mxu0 0
    %844 = vmatprep.subr.bf16.mxu0 0
    %845 = vmatpush1.bf16.xpose.msra.mxu0 0
    %846 = vmatprep.subr.bf16.mxu0 0
    %847 = vmatpush1.bf16.xpose.msra.mxu0 0
    %848 = vmatprep.subr.bf16.mxu0 0
    %849 = vmatpush1.bf16.xpose.msra.mxu0 0
    %850 = vmatprep.subr.bf16.mxu0 0
    %851 = vmatpush1.bf16.xpose.msra.mxu0 0
    %852 = vmatprep.subr.bf16.mxu0 0
    %853 = vmatpush1.bf16.xpose.msra.mxu0 0
    %854 = vmatprep.subr.bf16.mxu0 0
    %855 = vmatpush1.bf16.xpose.msra.mxu0 0
    %856 = vmatprep.subr.bf16.mxu0 0
    %857 = vmatpush1.bf16.xpose.msra.mxu0 0
    %858 = vmatprep.mubr.bf16.mxu0 0
    %859 = vmatmul.mubr.bf16.gmra.mrb[0].mxu0 %v810
    %v860 = vpop.f32.mrb[0].mxu0
    %v861 = vadd.f32 0.0, %v860
    %v862 = vpop.f32.mrb[0].mxu0
    %v863 = vpop.f32.mrb[0].mxu0
    %v864 = vpop.f32.mrb[0].mxu0
    %865 = vdwg.mxu0
    %866 = vmatprep.subr.bf16.mxu0 0
    %867 = vmatpush1.bf16.xpose.msra.mxu0 %v819
    %868 = vmatprep.subr.bf16.mxu0 0
    %869 = vmatpush1.bf16.xpose.msra.mxu0 0
    %870 = vmatprep.subr.bf16.mxu0 0
    %871 = vmatpush1.bf16.xpose.msra.mxu0 0
    %872 = vmatprep.subr.bf16.mxu0 0
    %873 = vmatpush1.bf16.xpose.msra.mxu0 0
    %874 = vmatprep.subr.bf16.mxu0 0
    %875 = vmatpush1.bf16.xpose.msra.mxu0 0
    %876 = vmatprep.subr.bf16.mxu0 0
    %877 = vmatpush1.bf16.xpose.msra.mxu0 0
    %878 = vmatprep.subr.bf16.mxu0 0
    %879 = vmatpush1.bf16.xpose.msra.mxu0 0
    %880 = vmatprep.subr.bf16.mxu0 0
    %881 = vmatpush1.bf16.xpose.msra.mxu0 0
    %882 = vmatprep.subr.bf16.mxu0 0
    %883 = vmatpush1.bf16.xpose.msra.mxu0 0
    %884 = vmatprep.subr.bf16.mxu0 0
    %885 = vmatpush1.bf16.xpose.msra.mxu0 0
    %886 = vmatprep.subr.bf16.mxu0 0
    %887 = vmatpush1.bf16.xpose.msra.mxu0 0
    %888 = vmatprep.subr.bf16.mxu0 0
    %889 = vmatpush1.bf16.xpose.msra.mxu0 0
    %890 = vmatprep.subr.bf16.mxu0 0
    %891 = vmatpush1.bf16.xpose.msra.mxu0 0
    %892 = vmatprep.subr.bf16.mxu0 0
    %893 = vmatpush1.bf16.xpose.msra.mxu0 0
    %894 = vmatprep.subr.bf16.mxu0 0
    %895 = vmatpush1.bf16.xpose.msra.mxu0 0
    %896 = vmatprep.subr.bf16.mxu0 0
    %897 = vmatpush1.bf16.xpose.msra.mxu0 0
    %898 = vmatprep.mubr.bf16.mxu0 0
    %899 = vmatmul.mubr.bf16.gmra.mrb[0].mxu0 %v811
    %v900 = vpop.f32.mrb[0].mxu0
    %v901 = vadd.f32 0.0, %v900
    %v902 = vpop.f32.mrb[0].mxu0
    %v903 = vpop.f32.mrb[0].mxu0
    %v904 = vpop.f32.mrb[0].mxu0
    %905 = vdwg.mxu0
    %906 = vmatprep.subr.bf16.mxu0 0
    %907 = vmatpush1.bf16.xpose.msra.mxu0 %v820
    %908 = vmatprep.subr.bf16.mxu0 0
    %909 = vmatpush1.bf16.xpose.msra.mxu0 0
    %910 = vmatprep.subr.bf16.mxu0 0
    %911 = vmatpush1.bf16.xpose.msra.mxu0 0
    %912 = vmatprep.subr.bf16.mxu0 0
    %913 = vmatpush1.bf16.xpose.msra.mxu0 0
    %914 = vmatprep.subr.bf16.mxu0 0
    %915 = vmatpush1.bf16.xpose.msra.mxu0 0
    %916 = vmatprep.subr.bf16.mxu0 0
    %917 = vmatpush1.bf16.xpose.msra.mxu0 0
    %918 = vmatprep.subr.bf16.mxu0 0
    %919 = vmatpush1.bf16.xpose.msra.mxu0 0
    %920 = vmatprep.subr.bf16.mxu0 0
    %921 = vmatpush1.bf16.xpose.msra.mxu0 0
    %922 = vmatprep.subr.bf16.mxu0 0
    %923 = vmatpush1.bf16.xpose.msra.mxu0 0
    %924 = vmatprep.subr.bf16.mxu0 0
    %925 = vmatpush1.bf16.xpose.msra.mxu0 0
    %926 = vmatprep.subr.bf16.mxu0 0
    %927 = vmatpush1.bf16.xpose.msra.mxu0 0
    %928 = vmatprep.subr.bf16.mxu0 0
    %929 = vmatpush1.bf16.xpose.msra.mxu0 0
    %930 = vmatprep.subr.bf16.mxu0 0
    %931 = vmatpush1.bf16.xpose.msra.mxu0 0
    %932 = vmatprep.subr.bf16.mxu0 0
    %933 = vmatpush1.bf16.xpose.msra.mxu0 0
    %934 = vmatprep.subr.bf16.mxu0 0
    %935 = vmatpush1.bf16.xpose.msra.mxu0 0
    %936 = vmatprep.subr.bf16.mxu0 0
    %937 = vmatpush1.bf16.xpose.msra.mxu0 0
    %938 = vmatprep.mubr.bf16.mxu0 0
    %939 = vmatmul.mubr.bf16.gmra.mrb[0].mxu0 %v812
    %v940 = vpop.f32.mrb[0].mxu0
    %v941 = vadd.f32 0.0, %v940
    %v942 = vpop.f32.mrb[0].mxu0
    %v943 = vpop.f32.mrb[0].mxu0
    %v944 = vpop.f32.mrb[0].mxu0
    %945 = vdwg.mxu0
    %946 = vmatprep.subr.bf16.mxu0 0
    %947 = vmatpush1.bf16.xpose.msra.mxu0 %v821
    %948 = vmatprep.subr.bf16.mxu0 0
    %949 = vmatpush1.bf16.xpose.msra.mxu0 0
    %950 = vmatprep.subr.bf16.mxu0 0
    %951 = vmatpush1.bf16.xpose.msra.mxu0 0
    %952 = vmatprep.subr.bf16.mxu0 0
    %953 = vmatpush1.bf16.xpose.msra.mxu0 0
    %954 = vmatprep.subr.bf16.mxu0 0
    %955 = vmatpush1.bf16.xpose.msra.mxu0 0
    %956 = vmatprep.subr.bf16.mxu0 0
    %957 = vmatpush1.bf16.xpose.msra.mxu0 0
    %958 = vmatprep.subr.bf16.mxu0 0
    %959 = vmatpush1.bf16.xpose.msra.mxu0 0
    %960 = vmatprep.subr.bf16.mxu0 0
    %961 = vmatpush1.bf16.xpose.msra.mxu0 0
    %962 = vmatprep.subr.bf16.mxu0 0
    %963 = vmatpush1.bf16.xpose.msra.mxu0 0
    %964 = vmatprep.subr.bf16.mxu0 0
    %965 = vmatpush1.bf16.xpose.msra.mxu0 0
    %966 = vmatprep.subr.bf16.mxu0 0
    %967 = vmatpush1.bf16.xpose.msra.mxu0 0
    %968 = vmatprep.subr.bf16.mxu0 0
    %969 = vmatpush1.bf16.xpose.msra.mxu0 0
    %970 = vmatprep.subr.bf16.mxu0 0
    %971 = vmatpush1.bf16.xpose.msra.mxu0 0
    %972 = vmatprep.subr.bf16.mxu0 0
    %973 = vmatpush1.bf16.xpose.msra.mxu0 0
    %974 = vmatprep.subr.bf16.mxu0 0
    %975 = vmatpush1.bf16.xpose.msra.mxu0 0
    %976 = vmatprep.subr.bf16.mxu0 0
    %977 = vmatpush1.bf16.xpose.msra.mxu0 0
    %978 = vmatprep.mubr.bf16.mxu0 0
    %979 = vmatmul.mubr.bf16.gmra.mrb[0].mxu0 %v813
    %v980 = vpop.f32.mrb[0].mxu0
    %v981 = vadd.f32 0.0, %v980
    %v982 = vpop.f32.mrb[0].mxu0
    %v983 = vpop.f32.mrb[0].mxu0
    %v984 = vpop.f32.mrb[0].mxu0
    %985 = vdwg.mxu0
    %986 = vmatprep.subr.bf16.mxu0 0
    %987 = vmatpush1.bf16.xpose.msra.mxu0 %v822
    %988 = vmatprep.subr.bf16.mxu0 0
    %989 = vmatpush1.bf16.xpose.msra.mxu0 0
    %990 = vmatprep.subr.bf16.mxu0 0
    %991 = vmatpush1.bf16.xpose.msra.mxu0 0
    %992 = vmatprep.subr.bf16.mxu0 0
    %993 = vmatpush1.bf16.xpose.msra.mxu0 0
    %994 = vmatprep.subr.bf16.mxu0 0
    %995 = vmatpush1.bf16.xpose.msra.mxu0 0
    %996 = vmatprep.subr.bf16.mxu0 0
    %997 = vmatpush1.bf16.xpose.msra.mxu0 0
    %998 = vmatprep.subr.bf16.mxu0 0
    %999 = vmatpush1.bf16.xpose.msra.mxu0 0
    %1000 = vmatprep.subr.bf16.mxu0 0
    %1001 = vmatpush1.bf16.xpose.msra.mxu0 0
    %1002 = vmatprep.subr.bf16.mxu0 0
    %1003 = vmatpush1.bf16.xpose.msra.mxu0 0
    %1004 = vmatprep.subr.bf16.mxu0 0
    %1005 = vmatpush1.bf16.xpose.msra.mxu0 0
    %1006 = vmatprep.subr.bf16.mxu0 0
    %1007 = vmatpush1.bf16.xpose.msra.mxu0 0
    %1008 = vmatprep.subr.bf16.mxu0 0
    %1009 = vmatpush1.bf16.xpose.msra.mxu0 0
    %1010 = vmatprep.subr.bf16.mxu0 0
    %1011 = vmatpush1.bf16.xpose.msra.mxu0 0
    %1012 = vmatprep.subr.bf16.mxu0 0
    %1013 = vmatpush1.bf16.xpose.msra.mxu0 0
    %1014 = vmatprep.subr.bf16.mxu0 0
    %1015 = vmatpush1.bf16.xpose.msra.mxu0 0
    %1016 = vmatprep.subr.bf16.mxu0 0
    %1017 = vmatpush1.bf16.xpose.msra.mxu0 0
    %1018 = vmatprep.mubr.bf16.mxu0 0
    %1019 = vmatmul.mubr.bf16.gmra.mrb[0].mxu0 %v814
    %v1020 = vpop.f32.mrb[0].mxu0
    %v1021 = vadd.f32 0.0, %v1020
    %v1022 = vpop.f32.mrb[0].mxu0
    %v1023 = vpop.f32.mrb[0].mxu0
    %v1024 = vpop.f32.mrb[0].mxu0
    %1025 = vdwg.mxu0
    %1026 = vmatprep.subr.bf16.mxu0 0
    %1027 = vmatpush1.bf16.xpose.msra.mxu0 %v823
    %1028 = vmatprep.subr.bf16.mxu0 0
    %1029 = vmatpush1.bf16.xpose.msra.mxu0 0
    %1030 = vmatprep.subr.bf16.mxu0 0
    %1031 = vmatpush1.bf16.xpose.msra.mxu0 0
    %1032 = vmatprep.subr.bf16.mxu0 0
    %1033 = vmatpush1.bf16.xpose.msra.mxu0 0
    %1034 = vmatprep.subr.bf16.mxu0 0
    %1035 = vmatpush1.bf16.xpose.msra.mxu0 0
    %1036 = vmatprep.subr.bf16.mxu0 0
    %1037 = vmatpush1.bf16.xpose.msra.mxu0 0
    %1038 = vmatprep.subr.bf16.mxu0 0
    %1039 = vmatpush1.bf16.xpose.msra.mxu0 0
    %1040 = vmatprep.subr.bf16.mxu0 0
    %1041 = vmatpush1.bf16.xpose.msra.mxu0 0
    %1042 = vmatprep.subr.bf16.mxu0 0
    %1043 = vmatpush1.bf16.xpose.msra.mxu0 0
    %1044 = vmatprep.subr.bf16.mxu0 0
    %1045 = vmatpush1.bf16.xpose.msra.mxu0 0
    %1046 = vmatprep.subr.bf16.mxu0 0
    %1047 = vmatpush1.bf16.xpose.msra.mxu0 0
    %1048 = vmatprep.subr.bf16.mxu0 0
    %1049 = vmatpush1.bf16.xpose.msra.mxu0 0
    %1050 = vmatprep.subr.bf16.mxu0 0
    %1051 = vmatpush1.bf16.xpose.msra.mxu0 0
    %1052 = vmatprep.subr.bf16.mxu0 0
    %1053 = vmatpush1.bf16.xpose.msra.mxu0 0
    %1054 = vmatprep.subr.bf16.mxu0 0
    %1055 = vmatpush1.bf16.xpose.msra.mxu0 0
    %1056 = vmatprep.subr.bf16.mxu0 0
    %1057 = vmatpush1.bf16.xpose.msra.mxu0 0
    %1058 = vmatprep.mubr.bf16.mxu0 0
    %1059 = vmatmul.mubr.bf16.gmra.mrb[0].mxu0 %v815
    %v1060 = vpop.f32.mrb[0].mxu0
    %v1061 = vadd.f32 0.0, %v1060
    %v1062 = vpop.f32.mrb[0].mxu0
    %v1063 = vpop.f32.mrb[0].mxu0
    %v1064 = vpop.f32.mrb[0].mxu0
    %1065 = vdwg.mxu0
    %1066 = vmatprep.subr.bf16.mxu0 0
    %1067 = vmatpush1.bf16.xpose.msra.mxu0 %v824
    %1068 = vmatprep.subr.bf16.mxu0 0
    %1069 = vmatpush1.bf16.xpose.msra.mxu0 0
    %1070 = vmatprep.subr.bf16.mxu0 0
    %1071 = vmatpush1.bf16.xpose.msra.mxu0 0
    %1072 = vmatprep.subr.bf16.mxu0 0
    %1073 = vmatpush1.bf16.xpose.msra.mxu0 0
    %1074 = vmatprep.subr.bf16.mxu0 0
    %1075 = vmatpush1.bf16.xpose.msra.mxu0 0
    %1076 = vmatprep.subr.bf16.mxu0 0
    %1077 = vmatpush1.bf16.xpose.msra.mxu0 0
    %1078 = vmatprep.subr.bf16.mxu0 0
    %1079 = vmatpush1.bf16.xpose.msra.mxu0 0
    %1080 = vmatprep.subr.bf16.mxu0 0
    %1081 = vmatpush1.bf16.xpose.msra.mxu0 0
    %1082 = vmatprep.subr.bf16.mxu0 0
    %1083 = vmatpush1.bf16.xpose.msra.mxu0 0
    %1084 = vmatprep.subr.bf16.mxu0 0
    %1085 = vmatpush1.bf16.xpose.msra.mxu0 0
    %1086 = vmatprep.subr.bf16.mxu0 0
    %1087 = vmatpush1.bf16.xpose.msra.mxu0 0
    %1088 = vmatprep.subr.bf16.mxu0 0
    %1089 = vmatpush1.bf16.xpose.msra.mxu0 0
    %1090 = vmatprep.subr.bf16.mxu0 0
    %1091 = vmatpush1.bf16.xpose.msra.mxu0 0
    %1092 = vmatprep.subr.bf16.mxu0 0
    %1093 = vmatpush1.bf16.xpose.msra.mxu0 0
    %1094 = vmatprep.subr.bf16.mxu0 0
    %1095 = vmatpush1.bf16.xpose.msra.mxu0 0
    %1096 = vmatprep.subr.bf16.mxu0 0
    %1097 = vmatpush1.bf16.xpose.msra.mxu0 0
    %1098 = vmatprep.mubr.bf16.mxu0 0
    %1099 = vmatmul.mubr.bf16.gmra.mrb[0].mxu0 %v816
    %v1100 = vpop.f32.mrb[0].mxu0
    %v1101 = vadd.f32 0.0, %v1100
    %v1102 = vpop.f32.mrb[0].mxu0
    %v1103 = vpop.f32.mrb[0].mxu0
    %v1104 = vpop.f32.mrb[0].mxu0
    %1105 = vdwg.mxu0
    %1106 = vmatprep.subr.bf16.mxu0 0
    %1107 = vmatpush1.bf16.xpose.msra.mxu0 %v825
    %1108 = vmatprep.subr.bf16.mxu0 0
    %1109 = vmatpush1.bf16.xpose.msra.mxu0 0
    %1110 = vmatprep.subr.bf16.mxu0 0
    %1111 = vmatpush1.bf16.xpose.msra.mxu0 0
    %1112 = vmatprep.subr.bf16.mxu0 0
    %1113 = vmatpush1.bf16.xpose.msra.mxu0 0
    %1114 = vmatprep.subr.bf16.mxu0 0
    %1115 = vmatpush1.bf16.xpose.msra.mxu0 0
    %1116 = vmatprep.subr.bf16.mxu0 0
    %1117 = vmatpush1.bf16.xpose.msra.mxu0 0
    %1118 = vmatprep.subr.bf16.mxu0 0
    %1119 = vmatpush1.bf16.xpose.msra.mxu0 0
    %1120 = vmatprep.subr.bf16.mxu0 0
    %1121 = vmatpush1.bf16.xpose.msra.mxu0 0
    %1122 = vmatprep.subr.bf16.mxu0 0
    %1123 = vmatpush1.bf16.xpose.msra.mxu0 0
    %1124 = vmatprep.subr.bf16.mxu0 0
    %1125 = vmatpush1.bf16.xpose.msra.mxu0 0
    %1126 = vmatprep.subr.bf16.mxu0 0
    %1127 = vmatpush1.bf16.xpose.msra.mxu0 0
    %1128 = vmatprep.subr.bf16.mxu0 0
    %1129 = vmatpush1.bf16.xpose.msra.mxu0 0
    %1130 = vmatprep.subr.bf16.mxu0 0
    %1131 = vmatpush1.bf16.xpose.msra.mxu0 0
    %1132 = vmatprep.subr.bf16.mxu0 0
    %1133 = vmatpush1.bf16.xpose.msra.mxu0 0
    %1134 = vmatprep.subr.bf16.mxu0 0
    %1135 = vmatpush1.bf16.xpose.msra.mxu0 0
    %1136 = vmatprep.subr.bf16.mxu0 0
    %1137 = vmatpush1.bf16.xpose.msra.mxu0 0
    %1138 = vmatprep.mubr.bf16.mxu0 0
    %1139 = vmatmul.mubr.bf16.gmra.mrb[0].mxu0 %v817
    %v1140 = vpop.f32.mrb[0].mxu0
    %v1141 = vadd.f32 0.0, %v1140
    %v1142 = vpop.f32.mrb[0].mxu0
    %v1143 = vpop.f32.mrb[0].mxu0
    %v1144 = vpop.f32.mrb[0].mxu0
    %1145 = vdwg.mxu0
    %v1146 = vld [vmem:[#allocation3] sm:$0xff]
    %v1147 = vld [vmem:[#allocation3 + $0x8] sm:$0xff]
    %v1148 = vld [vmem:[#allocation3 + $0x10] sm:$0xff]
    %v1149 = vld [vmem:[#allocation3 + $0x18] sm:$0xff]
    %v1150 = vld [vmem:[#allocation3 + $0x20] sm:$0xff]
    %v1151 = vld [vmem:[#allocation3 + $0x28] sm:$0xff]
    %v1152 = vld [vmem:[#allocation3 + $0x30] sm:$0xff]
    %v1153 = vld [vmem:[#allocation3 + $0x38] sm:$0xff]
    %vm1154 = vcmask 130048
    %v1155 = vsel %vm1154, %v861, -inf
    %1156 = vmax.xlane.f32.xlu0 %v1155
    %v1157 = vpop.xlane.xlu0 %1156
    %v1158 = vsel %vm1154, %v901, -inf
    %1159 = vmax.xlane.f32.xlu0 %v1158
    %v1160 = vpop.xlane.xlu0 %1159
    %v1161 = vsel %vm1154, %v941, -inf
    %1162 = vmax.xlane.f32.xlu0 %v1161
    %v1163 = vpop.xlane.xlu0 %1162
    %v1164 = vsel %vm1154, %v981, -inf
    %1165 = vmax.xlane.f32.xlu0 %v1164
    %v1166 = vpop.xlane.xlu0 %1165
    %v1167 = vsel %vm1154, %v1021, -inf
    %1168 = vmax.xlane.f32.xlu0 %v1167
    %v1169 = vpop.xlane.xlu0 %1168
    %v1170 = vsel %vm1154, %v1061, -inf
    %1171 = vmax.xlane.f32.xlu0 %v1170
    %v1172 = vpop.xlane.xlu0 %1171
    %v1173 = vsel %vm1154, %v1101, -inf
    %1174 = vmax.xlane.f32.xlu0 %v1173
    %v1175 = vpop.xlane.xlu0 %1174
    %v1176 = vsel %vm1154, %v1141, -inf
    %1177 = vmax.xlane.f32.xlu0 %v1176
    %v1178 = vpop.xlane.xlu0 %1177
    %v1179 = vmax.f32 %v1146, %v1157
    %v1180 = vmax.f32 %v1147, %v1160
    %v1181 = vmax.f32 %v1148, %v1163
    %v1182 = vmax.f32 %v1149, %v1166
    %v1183 = vmax.f32 %v1150, %v1169
    %v1184 = vmax.f32 %v1151, %v1172
    %v1185 = vmax.f32 %v1152, %v1175
    %v1186 = vmax.f32 %v1153, %v1178
    %v1187 = vsub.f32 %v1146, %v1179
    %v1188 = vsub.f32 %v1147, %v1180
    %v1189 = vsub.f32 %v1148, %v1181
    %v1190 = vsub.f32 %v1149, %v1182
    %v1191 = vsub.f32 %v1150, %v1183
    %v1192 = vsub.f32 %v1151, %v1184
    %v1193 = vsub.f32 %v1152, %v1185
    %v1194 = vsub.f32 %v1153, %v1186
    %v1195 = vmul.f32 %v1187, 1.442695
    %v1196 = vpow.pop %v1195
    %v1197 = vmul.f32 %v1188, 1.442695
    %v1198 = vpow.pop %v1197
    %v1199 = vmul.f32 %v1189, 1.442695
    %v1200 = vpow.pop %v1199
    %v1201 = vmul.f32 %v1190, 1.442695
    %v1202 = vpow.pop %v1201
    %v1203 = vmul.f32 %v1191, 1.442695
    %v1204 = vpow.pop %v1203
    %v1205 = vmul.f32 %v1192, 1.442695
    %v1206 = vpow.pop %v1205
    %v1207 = vmul.f32 %v1193, 1.442695
    %v1208 = vpow.pop %v1207
    %v1209 = vmul.f32 %v1194, 1.442695
    %v1210 = vpow.pop %v1209
    %1212 = vset.pattern.permute.xlu0 0
    %1213 = vperm.xlu0 %1212, %v1179
    %v1214 = vpop.permute.xlu0 %1213
    %1217 = vset.pattern.permute.xlu0 0
    %1218 = vperm.xlu0 %1217, %v1180
    %v1219 = vpop.permute.xlu0 %1218
    %1222 = vset.pattern.permute.xlu0 0
    %1223 = vperm.xlu0 %1222, %v1181
    %v1224 = vpop.permute.xlu0 %1223
    %1227 = vset.pattern.permute.xlu0 0
    %1228 = vperm.xlu0 %1227, %v1182
    %v1229 = vpop.permute.xlu0 %1228
    %1232 = vset.pattern.permute.xlu0 0
    %1233 = vperm.xlu0 %1232, %v1183
    %v1234 = vpop.permute.xlu0 %1233
    %1237 = vset.pattern.permute.xlu0 0
    %1238 = vperm.xlu0 %1237, %v1184
    %v1239 = vpop.permute.xlu0 %1238
    %1242 = vset.pattern.permute.xlu0 0
    %1243 = vperm.xlu0 %1242, %v1185
    %v1244 = vpop.permute.xlu0 %1243
    %1247 = vset.pattern.permute.xlu0 0
    %1248 = vperm.xlu0 %1247, %v1186
    %v1249 = vpop.permute.xlu0 %1248
    %v1251 = vsub.f32 %v861, %v1214
    %v1252 = vsub.f32 %v901, %v1219
    %v1253 = vsub.f32 %v941, %v1224
    %v1254 = vsub.f32 %v981, %v1229
    %v1255 = vsub.f32 %v1021, %v1234
    %v1256 = vsub.f32 %v1061, %v1239
    %v1257 = vsub.f32 %v1101, %v1244
    %v1258 = vsub.f32 %v1141, %v1249
    %v1259 = vmul.f32 %v1251, 1.442695
    %v1260 = vpow.pop %v1259
    %v1261 = vmul.f32 %v1252, 1.442695
    %v1262 = vpow.pop %v1261
    %v1263 = vmul.f32 %v1253, 1.442695
    %v1264 = vpow.pop %v1263
    %v1265 = vmul.f32 %v1254, 1.442695
    %v1266 = vpow.pop %v1265
    %v1267 = vmul.f32 %v1255, 1.442695
    %v1268 = vpow.pop %v1267
    %v1269 = vmul.f32 %v1256, 1.442695
    %v1270 = vpow.pop %v1269
    %v1271 = vmul.f32 %v1257, 1.442695
    %v1272 = vpow.pop %v1271
    %v1273 = vmul.f32 %v1258, 1.442695
    %v1274 = vpow.pop %v1273
    %v1275 = vld [vmem:[#allocation4] sm:$0xff]
    %v1276 = vld [vmem:[#allocation4 + $0x8] sm:$0xff]
    %v1277 = vld [vmem:[#allocation4 + $0x10] sm:$0xff]
    %v1278 = vld [vmem:[#allocation4 + $0x18] sm:$0xff]
    %v1279 = vld [vmem:[#allocation4 + $0x20] sm:$0xff]
    %v1280 = vld [vmem:[#allocation4 + $0x28] sm:$0xff]
    %v1281 = vld [vmem:[#allocation4 + $0x30] sm:$0xff]
    %v1282 = vld [vmem:[#allocation4 + $0x38] sm:$0xff]
    %v1283 = vmul.f32 %v1196, %v1275
    %v1284 = vmul.f32 %v1198, %v1276
    %v1285 = vmul.f32 %v1200, %v1277
    %v1286 = vmul.f32 %v1202, %v1278
    %v1287 = vmul.f32 %v1204, %v1279
    %v1288 = vmul.f32 %v1206, %v1280
    %v1289 = vmul.f32 %v1208, %v1281
    %v1290 = vmul.f32 %v1210, %v1282
    %v1291 = vsel %vm1154, %v1260, 0.0
    %1292 = vadd.xlane.f32.xlu0 %v1291
    %v1293 = vpop.xlane.xlu0 %1292
    %v1294 = vsel %vm1154, %v1262, 0.0
    %1295 = vadd.xlane.f32.xlu0 %v1294
    %v1296 = vpop.xlane.xlu0 %1295
    %v1297 = vsel %vm1154, %v1264, 0.0
    %1298 = vadd.xlane.f32.xlu0 %v1297
    %v1299 = vpop.xlane.xlu0 %1298
    %v1300 = vsel %vm1154, %v1266, 0.0
    %1301 = vadd.xlane.f32.xlu0 %v1300
    %v1302 = vpop.xlane.xlu0 %1301
    %v1303 = vsel %vm1154, %v1268, 0.0
    %1304 = vadd.xlane.f32.xlu0 %v1303
    %v1305 = vpop.xlane.xlu0 %1304
    %v1306 = vsel %vm1154, %v1270, 0.0
    %1307 = vadd.xlane.f32.xlu0 %v1306
    %v1308 = vpop.xlane.xlu0 %1307
    %v1309 = vsel %vm1154, %v1272, 0.0
    %1310 = vadd.xlane.f32.xlu0 %v1309
    %v1311 = vpop.xlane.xlu0 %1310
    %v1312 = vsel %vm1154, %v1274, 0.0
    %1313 = vadd.xlane.f32.xlu0 %v1312
    %v1314 = vpop.xlane.xlu0 %1313
    %v1315 = vadd.f32 %v1283, %v1293
    %v1316 = vadd.f32 %v1284, %v1296
    %v1317 = vadd.f32 %v1285, %v1299
    %v1318 = vadd.f32 %v1286, %v1302
    %v1319 = vadd.f32 %v1287, %v1305
    %v1320 = vadd.f32 %v1288, %v1308
    %v1321 = vadd.f32 %v1289, %v1311
    %v1322 = vadd.f32 %v1290, %v1314
    %vm1323 = vcmask 7168
    %1324 = vst.msk [vmem:[#allocation4] sm:$0xff] %vm1323, %v1315
    %1325 = vst.msk [vmem:[#allocation4 + $0x8] sm:$0xff] %vm1323, %v1316
    %1326 = vst.msk [vmem:[#allocation4 + $0x10] sm:$0xff] %vm1323, %v1317
    %1327 = vst.msk [vmem:[#allocation4 + $0x18] sm:$0xff] %vm1323, %v1318
    %1328 = vst.msk [vmem:[#allocation4 + $0x20] sm:$0xff] %vm1323, %v1319
    %1329 = vst.msk [vmem:[#allocation4 + $0x28] sm:$0xff] %vm1323, %v1320
    %1330 = vst.msk [vmem:[#allocation4 + $0x30] sm:$0xff] %vm1323, %v1321
    %1331 = vst.msk [vmem:[#allocation4 + $0x38] sm:$0xff] %vm1323, %v1322
    %v1332 = vld [vmem:[#allocation5] sm:$0xff]
    %v1333 = vld [vmem:[#allocation5 + $0x8] sm:$0xff]
    %v1334 = vld [vmem:[#allocation5 + $0x10] sm:$0xff]
    %v1335 = vld [vmem:[#allocation5 + $0x18] sm:$0xff]
    %v1336 = vld [vmem:[#allocation5 + $0x20] sm:$0xff]
    %v1337 = vld [vmem:[#allocation5 + $0x28] sm:$0xff]
    %v1338 = vld [vmem:[#allocation5 + $0x30] sm:$0xff]
    %v1339 = vld [vmem:[#allocation5 + $0x38] sm:$0xff]
    %1341 = vset.pattern.permute.xlu0 0
    %1342 = vperm.xlu0 %1341, %v1196
    %v1343 = vpop.permute.xlu0 %1342
    %1346 = vset.pattern.permute.xlu0 0
    %1347 = vperm.xlu0 %1346, %v1198
    %v1348 = vpop.permute.xlu0 %1347
    %1351 = vset.pattern.permute.xlu0 0
    %1352 = vperm.xlu0 %1351, %v1200
    %v1353 = vpop.permute.xlu0 %1352
    %1356 = vset.pattern.permute.xlu0 0
    %1357 = vperm.xlu0 %1356, %v1202
    %v1358 = vpop.permute.xlu0 %1357
    %1361 = vset.pattern.permute.xlu0 0
    %1362 = vperm.xlu0 %1361, %v1204
    %v1363 = vpop.permute.xlu0 %1362
    %1366 = vset.pattern.permute.xlu0 0
    %1367 = vperm.xlu0 %1366, %v1206
    %v1368 = vpop.permute.xlu0 %1367
    %1371 = vset.pattern.permute.xlu0 0
    %1372 = vperm.xlu0 %1371, %v1208
    %v1373 = vpop.permute.xlu0 %1372
    %1376 = vset.pattern.permute.xlu0 0
    %1377 = vperm.xlu0 %1376, %v1210
    %v1378 = vpop.permute.xlu0 %1377
    %v1380 = vmul.f32 %v1343, %v1332
    %v1381 = vmul.f32 %v1348, %v1333
    %v1382 = vmul.f32 %v1353, %v1334
    %v1383 = vmul.f32 %v1358, %v1335
    %v1384 = vmul.f32 %v1363, %v1336
    %v1385 = vmul.f32 %v1368, %v1337
    %v1386 = vmul.f32 %v1373, %v1338
    %v1387 = vmul.f32 %v1378, %v1339
    %v1388 = vpack.c.bf16 %v1260, %v1260
    %v1389 = vpack.c.bf16 %v1262, %v1262
    %v1390 = vpack.c.bf16 %v1264, %v1264
    %v1391 = vpack.c.bf16 %v1266, %v1266
    %v1392 = vpack.c.bf16 %v1268, %v1268
    %v1393 = vpack.c.bf16 %v1270, %v1270
    %v1394 = vpack.c.bf16 %v1272, %v1272
    %v1395 = vpack.c.bf16 %v1274, %v1274
    %v1396 = vpack.c.bf16 %v751, %v748
    %v1397 = vpack.c.bf16 %v759, %v756
    %v1398 = vpack.c.bf16 %v767, %v764
    %v1399 = vpack.c.bf16 %v775, %v772
    %v1400 = vpack.c.bf16 %v783, %v780
    %v1401 = vpack.c.bf16 %v791, %v788
    %v1402 = vpack.c.bf16 %v799, %v796
    %v1403 = vpack.c.bf16 %v807, %v804
    %v1405 = vsel %vm1154, %v1388, 0
    %1407 = vmatprep.subr.bf16.mxu0 0
    %1408 = vmatpush1.bf16.msra.mxu0 %v1396
    %1409 = vmatprep.subr.bf16.mxu0 0
    %1410 = vmatpush1.bf16.msra.mxu0 0
    %1411 = vmatprep.subr.bf16.mxu0 0
    %1412 = vmatpush1.bf16.msra.mxu0 0
    %1413 = vmatprep.subr.bf16.mxu0 0
    %1414 = vmatpush1.bf16.msra.mxu0 0
    %1415 = vmatprep.subr.bf16.mxu0 0
    %1416 = vmatpush1.bf16.msra.mxu0 0
    %1417 = vmatprep.subr.bf16.mxu0 0
    %1418 = vmatpush1.bf16.msra.mxu0 0
    %1419 = vmatprep.subr.bf16.mxu0 0
    %1420 = vmatpush1.bf16.msra.mxu0 0
    %1421 = vmatprep.subr.bf16.mxu0 0
    %1422 = vmatpush1.bf16.msra.mxu0 0
    %1423 = vmatprep.subr.bf16.mxu0 0
    %1424 = vmatpush1.bf16.msra.mxu0 0
    %1425 = vmatprep.subr.bf16.mxu0 0
    %1426 = vmatpush1.bf16.msra.mxu0 0
    %1427 = vmatprep.subr.bf16.mxu0 0
    %1428 = vmatpush1.bf16.msra.mxu0 0
    %1429 = vmatprep.subr.bf16.mxu0 0
    %1430 = vmatpush1.bf16.msra.mxu0 0
    %1431 = vmatprep.subr.bf16.mxu0 0
    %1432 = vmatpush1.bf16.msra.mxu0 0
    %1433 = vmatprep.subr.bf16.mxu0 0
    %1434 = vmatpush1.bf16.msra.mxu0 0
    %1435 = vmatprep.subr.bf16.mxu0 0
    %1436 = vmatpush1.bf16.msra.mxu0 0
    %1437 = vmatprep.subr.bf16.mxu0 0
    %1438 = vmatpush1.bf16.msra.mxu0 0
    %1439 = vmatprep.mubr.bf16.mxu0 0
    %1440 = vmatmul.mubr.bf16.gmra.mrb[0].mxu0 %v1405
    %v1441 = vpop.f32.mrb[0].mxu0
    %v1442 = vadd.f32 0.0, %v1441
    %v1443 = vpop.f32.mrb[0].mxu0
    %v1444 = vpop.f32.mrb[0].mxu0
    %v1445 = vpop.f32.mrb[0].mxu0
    %1446 = vdwg.mxu0
    %v1448 = vsel %vm1154, %v1389, 0
    %1450 = vmatprep.subr.bf16.mxu0 0
    %1451 = vmatpush1.bf16.msra.mxu0 %v1397
    %1452 = vmatprep.subr.bf16.mxu0 0
    %1453 = vmatpush1.bf16.msra.mxu0 0
    %1454 = vmatprep.subr.bf16.mxu0 0
    %1455 = vmatpush1.bf16.msra.mxu0 0
    %1456 = vmatprep.subr.bf16.mxu0 0
    %1457 = vmatpush1.bf16.msra.mxu0 0
    %1458 = vmatprep.subr.bf16.mxu0 0
    %1459 = vmatpush1.bf16.msra.mxu0 0
    %1460 = vmatprep.subr.bf16.mxu0 0
    %1461 = vmatpush1.bf16.msra.mxu0 0
    %1462 = vmatprep.subr.bf16.mxu0 0
    %1463 = vmatpush1.bf16.msra.mxu0 0
    %1464 = vmatprep.subr.bf16.mxu0 0
    %1465 = vmatpush1.bf16.msra.mxu0 0
    %1466 = vmatprep.subr.bf16.mxu0 0
    %1467 = vmatpush1.bf16.msra.mxu0 0
    %1468 = vmatprep.subr.bf16.mxu0 0
    %1469 = vmatpush1.bf16.msra.mxu0 0
    %1470 = vmatprep.subr.bf16.mxu0 0
    %1471 = vmatpush1.bf16.msra.mxu0 0
    %1472 = vmatprep.subr.bf16.mxu0 0
    %1473 = vmatpush1.bf16.msra.mxu0 0
    %1474 = vmatprep.subr.bf16.mxu0 0
    %1475 = vmatpush1.bf16.msra.mxu0 0
    %1476 = vmatprep.subr.bf16.mxu0 0
    %1477 = vmatpush1.bf16.msra.mxu0 0
    %1478 = vmatprep.subr.bf16.mxu0 0
    %1479 = vmatpush1.bf16.msra.mxu0 0
    %1480 = vmatprep.subr.bf16.mxu0 0
    %1481 = vmatpush1.bf16.msra.mxu0 0
    %1482 = vmatprep.mubr.bf16.mxu0 0
    %1483 = vmatmul.mubr.bf16.gmra.mrb[0].mxu0 %v1448
    %v1484 = vpop.f32.mrb[0].mxu0
    %v1485 = vadd.f32 0.0, %v1484
    %v1486 = vpop.f32.mrb[0].mxu0
    %v1487 = vpop.f32.mrb[0].mxu0
    %v1488 = vpop.f32.mrb[0].mxu0
    %1489 = vdwg.mxu0
    %v1491 = vsel %vm1154, %v1390, 0
    %1493 = vmatprep.subr.bf16.mxu0 0
    %1494 = vmatpush1.bf16.msra.mxu0 %v1398
    %1495 = vmatprep.subr.bf16.mxu0 0
    %1496 = vmatpush1.bf16.msra.mxu0 0
    %1497 = vmatprep.subr.bf16.mxu0 0
    %1498 = vmatpush1.bf16.msra.mxu0 0
    %1499 = vmatprep.subr.bf16.mxu0 0
    %1500 = vmatpush1.bf16.msra.mxu0 0
    %1501 = vmatprep.subr.bf16.mxu0 0
    %1502 = vmatpush1.bf16.msra.mxu0 0
    %1503 = vmatprep.subr.bf16.mxu0 0
    %1504 = vmatpush1.bf16.msra.mxu0 0
    %1505 = vmatprep.subr.bf16.mxu0 0
    %1506 = vmatpush1.bf16.msra.mxu0 0
    %1507 = vmatprep.subr.bf16.mxu0 0
    %1508 = vmatpush1.bf16.msra.mxu0 0
    %1509 = vmatprep.subr.bf16.mxu0 0
    %1510 = vmatpush1.bf16.msra.mxu0 0
    %1511 = vmatprep.subr.bf16.mxu0 0
    %1512 = vmatpush1.bf16.msra.mxu0 0
    %1513 = vmatprep.subr.bf16.mxu0 0
    %1514 = vmatpush1.bf16.msra.mxu0 0
    %1515 = vmatprep.subr.bf16.mxu0 0
    %1516 = vmatpush1.bf16.msra.mxu0 0
    %1517 = vmatprep.subr.bf16.mxu0 0
    %1518 = vmatpush1.bf16.msra.mxu0 0
    %1519 = vmatprep.subr.bf16.mxu0 0
    %1520 = vmatpush1.bf16.msra.mxu0 0
    %1521 = vmatprep.subr.bf16.mxu0 0
    %1522 = vmatpush1.bf16.msra.mxu0 0
    %1523 = vmatprep.subr.bf16.mxu0 0
    %1524 = vmatpush1.bf16.msra.mxu0 0
    %1525 = vmatprep.mubr.bf16.mxu0 0
    %1526 = vmatmul.mubr.bf16.gmra.mrb[0].mxu0 %v1491
    %v1527 = vpop.f32.mrb[0].mxu0
    %v1528 = vadd.f32 0.0, %v1527
    %v1529 = vpop.f32.mrb[0].mxu0
    %v1530 = vpop.f32.mrb[0].mxu0
    %v1531 = vpop.f32.mrb[0].mxu0
    %1532 = vdwg.mxu0
    %v1534 = vsel %vm1154, %v1391, 0
    %1536 = vmatprep.subr.bf16.mxu0 0
    %1537 = vmatpush1.bf16.msra.mxu0 %v1399
    %1538 = vmatprep.subr.bf16.mxu0 0
    %1539 = vmatpush1.bf16.msra.mxu0 0
    %1540 = vmatprep.subr.bf16.mxu0 0
    %1541 = vmatpush1.bf16.msra.mxu0 0
    %1542 = vmatprep.subr.bf16.mxu0 0
    %1543 = vmatpush1.bf16.msra.mxu0 0
    %1544 = vmatprep.subr.bf16.mxu0 0
    %1545 = vmatpush1.bf16.msra.mxu0 0
    %1546 = vmatprep.subr.bf16.mxu0 0
    %1547 = vmatpush1.bf16.msra.mxu0 0
    %1548 = vmatprep.subr.bf16.mxu0 0
    %1549 = vmatpush1.bf16.msra.mxu0 0
    %1550 = vmatprep.subr.bf16.mxu0 0
    %1551 = vmatpush1.bf16.msra.mxu0 0
    %1552 = vmatprep.subr.bf16.mxu0 0
    %1553 = vmatpush1.bf16.msra.mxu0 0
    %1554 = vmatprep.subr.bf16.mxu0 0
    %1555 = vmatpush1.bf16.msra.mxu0 0
    %1556 = vmatprep.subr.bf16.mxu0 0
    %1557 = vmatpush1.bf16.msra.mxu0 0
    %1558 = vmatprep.subr.bf16.mxu0 0
    %1559 = vmatpush1.bf16.msra.mxu0 0
    %1560 = vmatprep.subr.bf16.mxu0 0
    %1561 = vmatpush1.bf16.msra.mxu0 0
    %1562 = vmatprep.subr.bf16.mxu0 0
    %1563 = vmatpush1.bf16.msra.mxu0 0
    %1564 = vmatprep.subr.bf16.mxu0 0
    %1565 = vmatpush1.bf16.msra.mxu0 0
    %1566 = vmatprep.subr.bf16.mxu0 0
    %1567 = vmatpush1.bf16.msra.mxu0 0
    %1568 = vmatprep.mubr.bf16.mxu0 0
    %1569 = vmatmul.mubr.bf16.gmra.mrb[0].mxu0 %v1534
    %v1570 = vpop.f32.mrb[0].mxu0
    %v1571 = vadd.f32 0.0, %v1570
    %v1572 = vpop.f32.mrb[0].mxu0
    %v1573 = vpop.f32.mrb[0].mxu0
    %v1574 = vpop.f32.mrb[0].mxu0
    %1575 = vdwg.mxu0
    %v1577 = vsel %vm1154, %v1392, 0
    %1579 = vmatprep.subr.bf16.mxu0 0
    %1580 = vmatpush1.bf16.msra.mxu0 %v1400
    %1581 = vmatprep.subr.bf16.mxu0 0
    %1582 = vmatpush1.bf16.msra.mxu0 0
    %1583 = vmatprep.subr.bf16.mxu0 0
    %1584 = vmatpush1.bf16.msra.mxu0 0
    %1585 = vmatprep.subr.bf16.mxu0 0
    %1586 = vmatpush1.bf16.msra.mxu0 0
    %1587 = vmatprep.subr.bf16.mxu0 0
    %1588 = vmatpush1.bf16.msra.mxu0 0
    %1589 = vmatprep.subr.bf16.mxu0 0
    %1590 = vmatpush1.bf16.msra.mxu0 0
    %1591 = vmatprep.subr.bf16.mxu0 0
    %1592 = vmatpush1.bf16.msra.mxu0 0
    %1593 = vmatprep.subr.bf16.mxu0 0
    %1594 = vmatpush1.bf16.msra.mxu0 0
    %1595 = vmatprep.subr.bf16.mxu0 0
    %1596 = vmatpush1.bf16.msra.mxu0 0
    %1597 = vmatprep.subr.bf16.mxu0 0
    %1598 = vmatpush1.bf16.msra.mxu0 0
    %1599 = vmatprep.subr.bf16.mxu0 0
    %1600 = vmatpush1.bf16.msra.mxu0 0
    %1601 = vmatprep.subr.bf16.mxu0 0
    %1602 = vmatpush1.bf16.msra.mxu0 0
    %1603 = vmatprep.subr.bf16.mxu0 0
    %1604 = vmatpush1.bf16.msra.mxu0 0
    %1605 = vmatprep.subr.bf16.mxu0 0
    %1606 = vmatpush1.bf16.msra.mxu0 0
    %1607 = vmatprep.subr.bf16.mxu0 0
    %1608 = vmatpush1.bf16.msra.mxu0 0
    %1609 = vmatprep.subr.bf16.mxu0 0
    %1610 = vmatpush1.bf16.msra.mxu0 0
    %1611 = vmatprep.mubr.bf16.mxu0 0
    %1612 = vmatmul.mubr.bf16.gmra.mrb[0].mxu0 %v1577
    %v1613 = vpop.f32.mrb[0].mxu0
    %v1614 = vadd.f32 0.0, %v1613
    %v1615 = vpop.f32.mrb[0].mxu0
    %v1616 = vpop.f32.mrb[0].mxu0
    %v1617 = vpop.f32.mrb[0].mxu0
    %1618 = vdwg.mxu0
    %v1620 = vsel %vm1154, %v1393, 0
    %1622 = vmatprep.subr.bf16.mxu0 0
    %1623 = vmatpush1.bf16.msra.mxu0 %v1401
    %1624 = vmatprep.subr.bf16.mxu0 0
    %1625 = vmatpush1.bf16.msra.mxu0 0
    %1626 = vmatprep.subr.bf16.mxu0 0
    %1627 = vmatpush1.bf16.msra.mxu0 0
    %1628 = vmatprep.subr.bf16.mxu0 0
    %1629 = vmatpush1.bf16.msra.mxu0 0
    %1630 = vmatprep.subr.bf16.mxu0 0
    %1631 = vmatpush1.bf16.msra.mxu0 0
    %1632 = vmatprep.subr.bf16.mxu0 0
    %1633 = vmatpush1.bf16.msra.mxu0 0
    %1634 = vmatprep.subr.bf16.mxu0 0
    %1635 = vmatpush1.bf16.msra.mxu0 0
    %1636 = vmatprep.subr.bf16.mxu0 0
    %1637 = vmatpush1.bf16.msra.mxu0 0
    %1638 = vmatprep.subr.bf16.mxu0 0
    %1639 = vmatpush1.bf16.msra.mxu0 0
    %1640 = vmatprep.subr.bf16.mxu0 0
    %1641 = vmatpush1.bf16.msra.mxu0 0
    %1642 = vmatprep.subr.bf16.mxu0 0
    %1643 = vmatpush1.bf16.msra.mxu0 0
    %1644 = vmatprep.subr.bf16.mxu0 0
    %1645 = vmatpush1.bf16.msra.mxu0 0
    %1646 = vmatprep.subr.bf16.mxu0 0
    %1647 = vmatpush1.bf16.msra.mxu0 0
    %1648 = vmatprep.subr.bf16.mxu0 0
    %1649 = vmatpush1.bf16.msra.mxu0 0
    %1650 = vmatprep.subr.bf16.mxu0 0
    %1651 = vmatpush1.bf16.msra.mxu0 0
    %1652 = vmatprep.subr.bf16.mxu0 0
    %1653 = vmatpush1.bf16.msra.mxu0 0
    %1654 = vmatprep.mubr.bf16.mxu0 0
    %1655 = vmatmul.mubr.bf16.gmra.mrb[0].mxu0 %v1620
    %v1656 = vpop.f32.mrb[0].mxu0
    %v1657 = vadd.f32 0.0, %v1656
    %v1658 = vpop.f32.mrb[0].mxu0
    %v1659 = vpop.f32.mrb[0].mxu0
    %v1660 = vpop.f32.mrb[0].mxu0
    %1661 = vdwg.mxu0
    %v1663 = vsel %vm1154, %v1394, 0
    %1665 = vmatprep.subr.bf16.mxu0 0
    %1666 = vmatpush1.bf16.msra.mxu0 %v1402
    %1667 = vmatprep.subr.bf16.mxu0 0
    %1668 = vmatpush1.bf16.msra.mxu0 0
    %1669 = vmatprep.subr.bf16.mxu0 0
    %1670 = vmatpush1.bf16.msra.mxu0 0
    %1671 = vmatprep.subr.bf16.mxu0 0
    %1672 = vmatpush1.bf16.msra.mxu0 0
    %1673 = vmatprep.subr.bf16.mxu0 0
    %1674 = vmatpush1.bf16.msra.mxu0 0
    %1675 = vmatprep.subr.bf16.mxu0 0
    %1676 = vmatpush1.bf16.msra.mxu0 0
    %1677 = vmatprep.subr.bf16.mxu0 0
    %1678 = vmatpush1.bf16.msra.mxu0 0
    %1679 = vmatprep.subr.bf16.mxu0 0
    %1680 = vmatpush1.bf16.msra.mxu0 0
    %1681 = vmatprep.subr.bf16.mxu0 0
    %1682 = vmatpush1.bf16.msra.mxu0 0
    %1683 = vmatprep.subr.bf16.mxu0 0
    %1684 = vmatpush1.bf16.msra.mxu0 0
    %1685 = vmatprep.subr.bf16.mxu0 0
    %1686 = vmatpush1.bf16.msra.mxu0 0
    %1687 = vmatprep.subr.bf16.mxu0 0
    %1688 = vmatpush1.bf16.msra.mxu0 0
    %1689 = vmatprep.subr.bf16.mxu0 0
    %1690 = vmatpush1.bf16.msra.mxu0 0
    %1691 = vmatprep.subr.bf16.mxu0 0
    %1692 = vmatpush1.bf16.msra.mxu0 0
    %1693 = vmatprep.subr.bf16.mxu0 0
    %1694 = vmatpush1.bf16.msra.mxu0 0
    %1695 = vmatprep.subr.bf16.mxu0 0
    %1696 = vmatpush1.bf16.msra.mxu0 0
    %1697 = vmatprep.mubr.bf16.mxu0 0
    %1698 = vmatmul.mubr.bf16.gmra.mrb[0].mxu0 %v1663
    %v1699 = vpop.f32.mrb[0].mxu0
    %v1700 = vadd.f32 0.0, %v1699
    %v1701 = vpop.f32.mrb[0].mxu0
    %v1702 = vpop.f32.mrb[0].mxu0
    %v1703 = vpop.f32.mrb[0].mxu0
    %1704 = vdwg.mxu0
    %v1706 = vsel %vm1154, %v1395, 0
    %1708 = vmatprep.subr.bf16.mxu0 0
    %1709 = vmatpush1.bf16.msra.mxu0 %v1403
    %1710 = vmatprep.subr.bf16.mxu0 0
    %1711 = vmatpush1.bf16.msra.mxu0 0
    %1712 = vmatprep.subr.bf16.mxu0 0
    %1713 = vmatpush1.bf16.msra.mxu0 0
    %1714 = vmatprep.subr.bf16.mxu0 0
    %1715 = vmatpush1.bf16.msra.mxu0 0
    %1716 = vmatprep.subr.bf16.mxu0 0
    %1717 = vmatpush1.bf16.msra.mxu0 0
    %1718 = vmatprep.subr.bf16.mxu0 0
    %1719 = vmatpush1.bf16.msra.mxu0 0
    %1720 = vmatprep.subr.bf16.mxu0 0
    %1721 = vmatpush1.bf16.msra.mxu0 0
    %1722 = vmatprep.subr.bf16.mxu0 0
    %1723 = vmatpush1.bf16.msra.mxu0 0
    %1724 = vmatprep.subr.bf16.mxu0 0
    %1725 = vmatpush1.bf16.msra.mxu0 0
    %1726 = vmatprep.subr.bf16.mxu0 0
    %1727 = vmatpush1.bf16.msra.mxu0 0
    %1728 = vmatprep.subr.bf16.mxu0 0
    %1729 = vmatpush1.bf16.msra.mxu0 0
    %1730 = vmatprep.subr.bf16.mxu0 0
    %1731 = vmatpush1.bf16.msra.mxu0 0
    %1732 = vmatprep.subr.bf16.mxu0 0
    %1733 = vmatpush1.bf16.msra.mxu0 0
    %1734 = vmatprep.subr.bf16.mxu0 0
    %1735 = vmatpush1.bf16.msra.mxu0 0
    %1736 = vmatprep.subr.bf16.mxu0 0
    %1737 = vmatpush1.bf16.msra.mxu0 0
    %1738 = vmatprep.subr.bf16.mxu0 0
    %1739 = vmatpush1.bf16.msra.mxu0 0
    %1740 = vmatprep.mubr.bf16.mxu0 0
    %1741 = vmatmul.mubr.bf16.gmra.mrb[0].mxu0 %v1706
    %v1742 = vpop.f32.mrb[0].mxu0
    %v1743 = vadd.f32 0.0, %v1742
    %v1744 = vpop.f32.mrb[0].mxu0
    %v1745 = vpop.f32.mrb[0].mxu0
    %v1746 = vpop.f32.mrb[0].mxu0
    %1747 = vdwg.mxu0
    %v1748 = vadd.f32 %v1380, %v1442
    %v1749 = vadd.f32 %v1381, %v1485
    %v1750 = vadd.f32 %v1382, %v1528
    %v1751 = vadd.f32 %v1383, %v1571
    %v1752 = vadd.f32 %v1384, %v1614
    %v1753 = vadd.f32 %v1385, %v1657
    %v1754 = vadd.f32 %v1386, %v1700
    %v1755 = vadd.f32 %v1387, %v1743
    %1756 = vst [vmem:[#allocation5] sm:$0xff] %v1748
    %1757 = vst [vmem:[#allocation5 + $0x8] sm:$0xff] %v1749
    %1758 = vst [vmem:[#allocation5 + $0x10] sm:$0xff] %v1750
    %1759 = vst [vmem:[#allocation5 + $0x18] sm:$0xff] %v1751
    %1760 = vst [vmem:[#allocation5 + $0x20] sm:$0xff] %v1752
    %1761 = vst [vmem:[#allocation5 + $0x28] sm:$0xff] %v1753
    %1762 = vst [vmem:[#allocation5 + $0x30] sm:$0xff] %v1754
    %1763 = vst [vmem:[#allocation5 + $0x38] sm:$0xff] %v1755
    %1764 = vst.msk [vmem:[#allocation3] sm:$0xff] %vm1323, %v1179
    %1765 = vst.msk [vmem:[#allocation3 + $0x8] sm:$0xff] %vm1323, %v1180
    %1766 = vst.msk [vmem:[#allocation3 + $0x10] sm:$0xff] %vm1323, %v1181
    %1767 = vst.msk [vmem:[#allocation3 + $0x18] sm:$0xff] %vm1323, %v1182
    %1768 = vst.msk [vmem:[#allocation3 + $0x20] sm:$0xff] %vm1323, %v1183
    %1769 = vst.msk [vmem:[#allocation3 + $0x28] sm:$0xff] %vm1323, %v1184
    %1770 = vst.msk [vmem:[#allocation3 + $0x30] sm:$0xff] %vm1323, %v1185
    %1771 = vst.msk [vmem:[#allocation3 + $0x38] sm:$0xff] %vm1323, %v1186
    // Predicated region
    $region118: #{tpu_custom_call.1} parent=1 // pred_check
      %p1772 = pneg %p197
    $region119: #{tpu_custom_call.1} parent=1 // pred_check_branch
      %1774 = sbr.rel (%p1772) target = $region121
    $region120: #{tpu_custom_call.1} parent=1 // pred_region
      %v1775 = vld [vmem:[#allocation5] sm:$0xff]
      %v1776 = vld [vmem:[#allocation5 + $0x8] sm:$0xff]
      %v1777 = vld [vmem:[#allocation5 + $0x10] sm:$0xff]
      %v1778 = vld [vmem:[#allocation5 + $0x18] sm:$0xff]
      %v1779 = vld [vmem:[#allocation5 + $0x20] sm:$0xff]
      %v1780 = vld [vmem:[#allocation5 + $0x28] sm:$0xff]
      %v1781 = vld [vmem:[#allocation5 + $0x30] sm:$0xff]
      %v1782 = vld [vmem:[#allocation5 + $0x38] sm:$0xff]
      %v1783 = vld [vmem:[#allocation4] sm:$0xff]
      %v1784 = vld [vmem:[#allocation4 + $0x8] sm:$0xff]
      %v1785 = vld [vmem:[#allocation4 + $0x10] sm:$0xff]
      %v1786 = vld [vmem:[#allocation4 + $0x18] sm:$0xff]
      %v1787 = vld [vmem:[#allocation4 + $0x20] sm:$0xff]
      %v1788 = vld [vmem:[#allocation4 + $0x28] sm:$0xff]
      %v1789 = vld [vmem:[#allocation4 + $0x30] sm:$0xff]
      %v1790 = vld [vmem:[#allocation4 + $0x38] sm:$0xff]
      %v1791 = vrcp.pop %v1783
      %v1792 = vrcp.pop %v1784
      %v1793 = vrcp.pop %v1785
      %v1794 = vrcp.pop %v1786
      %v1795 = vrcp.pop %v1787
      %v1796 = vrcp.pop %v1788
      %v1797 = vrcp.pop %v1789
      %v1798 = vrcp.pop %v1790
      %1800 = vset.pattern.permute.xlu0 0
      %1801 = vperm.xlu0 %1800, %v1791
      %v1802 = vpop.permute.xlu0 %1801
      %1805 = vset.pattern.permute.xlu0 0
      %1806 = vperm.xlu0 %1805, %v1792
      %v1807 = vpop.permute.xlu0 %1806
      %1810 = vset.pattern.permute.xlu0 0
      %1811 = vperm.xlu0 %1810, %v1793
      %v1812 = vpop.permute.xlu0 %1811
      %1815 = vset.pattern.permute.xlu0 0
      %1816 = vperm.xlu0 %1815, %v1794
      %v1817 = vpop.permute.xlu0 %1816
      %1820 = vset.pattern.permute.xlu0 0
      %1821 = vperm.xlu0 %1820, %v1795
      %v1822 = vpop.permute.xlu0 %1821
      %1825 = vset.pattern.permute.xlu0 0
      %1826 = vperm.xlu0 %1825, %v1796
      %v1827 = vpop.permute.xlu0 %1826
      %1830 = vset.pattern.permute.xlu0 0
      %1831 = vperm.xlu0 %1830, %v1797
      %v1832 = vpop.permute.xlu0 %1831
      %1835 = vset.pattern.permute.xlu0 0
      %1836 = vperm.xlu0 %1835, %v1798
      %v1837 = vpop.permute.xlu0 %1836
      %v1839 = vmul.f32 %v1775, %v1802
      %v1840 = vmul.f32 %v1776, %v1807
      %v1841 = vmul.f32 %v1777, %v1812
      %v1842 = vmul.f32 %v1778, %v1817
      %v1843 = vmul.f32 %v1779, %v1822
      %v1844 = vmul.f32 %v1780, %v1827
      %v1845 = vmul.f32 %v1781, %v1832
      %v1846 = vmul.f32 %v1782, %v1837
      %v1847 = vrot.slane %v1839, 4
      %v1848 = vadd.f32 %v1839, %v1847
      %v1849 = vrot.slane %v1848, 2
      %v1850 = vadd.f32 %v1848, %v1849
      %v1851 = vrot.slane %v1850, 1
      %v1852 = vadd.f32 %v1850, %v1851
      %v1853 = vrot.slane %v1840, 4
      %v1854 = vadd.f32 %v1840, %v1853
      %v1855 = vrot.slane %v1854, 2
      %v1856 = vadd.f32 %v1854, %v1855
      %v1857 = vrot.slane %v1856, 1
      %v1858 = vadd.f32 %v1856, %v1857
      %v1859 = vrot.slane %v1841, 4
      %v1860 = vadd.f32 %v1841, %v1859
      %v1861 = vrot.slane %v1860, 2
      %v1862 = vadd.f32 %v1860, %v1861
      %v1863 = vrot.slane %v1862, 1
      %v1864 = vadd.f32 %v1862, %v1863
      %v1865 = vrot.slane %v1842, 4
      %v1866 = vadd.f32 %v1842, %v1865
      %v1867 = vrot.slane %v1866, 2
      %v1868 = vadd.f32 %v1866, %v1867
      %v1869 = vrot.slane %v1868, 1
      %v1870 = vadd.f32 %v1868, %v1869
      %v1871 = vrot.slane %v1843, 4
      %v1872 = vadd.f32 %v1843, %v1871
      %v1873 = vrot.slane %v1872, 2
      %v1874 = vadd.f32 %v1872, %v1873
      %v1875 = vrot.slane %v1874, 1
      %v1876 = vadd.f32 %v1874, %v1875
      %v1877 = vrot.slane %v1844, 4
      %v1878 = vadd.f32 %v1844, %v1877
      %v1879 = vrot.slane %v1878, 2
      %v1880 = vadd.f32 %v1878, %v1879
      %v1881 = vrot.slane %v1880, 1
      %v1882 = vadd.f32 %v1880, %v1881
      %v1883 = vrot.slane %v1845, 4
      %v1884 = vadd.f32 %v1845, %v1883
      %v1885 = vrot.slane %v1884, 2
      %v1886 = vadd.f32 %v1884, %v1885
      %v1887 = vrot.slane %v1886, 1
      %v1888 = vadd.f32 %v1886, %v1887
      %v1889 = vrot.slane %v1846, 4
      %v1890 = vadd.f32 %v1846, %v1889
      %v1891 = vrot.slane %v1890, 2
      %v1892 = vadd.f32 %v1890, %v1891
      %v1893 = vrot.slane %v1892, 1
      %v1894 = vadd.f32 %v1892, %v1893
      %v1895 = vmul.f32 %v1852, 0.125
      %v1896 = vmul.f32 %v1858, 0.125
      %v1897 = vmul.f32 %v1864, 0.125
      %v1898 = vmul.f32 %v1870, 0.125
      %v1899 = vmul.f32 %v1876, 0.125
      %v1900 = vmul.f32 %v1882, 0.125
      %v1901 = vmul.f32 %v1888, 0.125
      %v1902 = vmul.f32 %v1894, 0.125
      %v1903 = vpack.c.bf16 %v1895, %v1895
      %v1904 = vpack.c.bf16 %v1896, %v1896
      %v1905 = vpack.c.bf16 %v1897, %v1897
      %v1906 = vpack.c.bf16 %v1898, %v1898
      %v1907 = vpack.c.bf16 %v1899, %v1899
      %v1908 = vpack.c.bf16 %v1900, %v1900
      %v1909 = vpack.c.bf16 %v1901, %v1901
      %v1910 = vpack.c.bf16 %v1902, %v1902
      %v1911 = vld [vmem:[#allocation15] sm:$0xf]
      %v1912 = vld [vmem:[#allocation15 + $0x4] sm:$0xf]
      %v1913 = vld [vmem:[#allocation15 + $0x8] sm:$0xf]
      %v1914 = vld [vmem:[#allocation15 + $0xc] sm:$0xf]
      %v1915 = vld [vmem:[#allocation15 + $0x10] sm:$0xf]
      %v1916 = vld [vmem:[#allocation15 + $0x14] sm:$0xf]
      %v1917 = vld [vmem:[#allocation15 + $0x18] sm:$0xf]
      %v1918 = vld [vmem:[#allocation15 + $0x1c] sm:$0xf]
      %v1919 = vld [vmem:[#allocation15 + $0x20] sm:$0xf]
      %v1920 = vld [vmem:[#allocation15 + $0x24] sm:$0xf]
      %v1921 = vld [vmem:[#allocation15 + $0x28] sm:$0xf]
      %v1922 = vld [vmem:[#allocation15 + $0x2c] sm:$0xf]
      %v1923 = vld [vmem:[#allocation15 + $0x30] sm:$0xf]
      %v1924 = vld [vmem:[#allocation15 + $0x34] sm:$0xf]
      %v1925 = vld [vmem:[#allocation15 + $0x38] sm:$0xf]
      %v1926 = vld [vmem:[#allocation15 + $0x3c] sm:$0xf]
      %v1927 = vld [vmem:[%s9] sm:$0x1]
      %v1929 = vlaneseq
      %v1930 = vshrl.u32 %v1929, 7
      %v1931 = vsub.s32 0, %v1930
      %v1932 = vrot.slane %v1927, %v1931
      %v1942 = vunpack.c.l.b16 %v1903
      %v1943 = vunpack.c.l.b16 %v1904
      %v1944 = vunpack.c.l.b16 %v1905
      %v1945 = vunpack.c.l.b16 %v1906
      %v1946 = vunpack.c.l.b16 %v1907
      %v1947 = vunpack.c.l.b16 %v1908
      %v1948 = vunpack.c.l.b16 %v1909
      %v1949 = vunpack.c.l.b16 %v1910
      %vm1950 = vcmask 1041409
      %v1951 = vsel %vm1950, %v1943, %v1942
      %vm1952 = vcmask 1042434
      %v1953 = vsel %vm1952, %v1944, %v1951
      %vm1954 = vcmask 1043459
      %v1955 = vsel %vm1954, %v1945, %v1953
      %vm1956 = vcmask 1044484
      %v1957 = vsel %vm1956, %v1946, %v1955
      %vm1958 = vcmask 1045509
      %v1959 = vsel %vm1958, %v1947, %v1957
      %vm1960 = vcmask 1046534
      %v1961 = vsel %vm1960, %v1948, %v1959
      %vm1962 = vcmask 1047559
      %v1963 = vsel %vm1962, %v1949, %v1961
      %v1964 = vpack.c.b16 %v1963, %v1963
      %v1982 = vunpack.c.l.b16 %v1911
      %v1983 = vunpack.c.l.b16 %v1912
      %v1984 = vunpack.c.l.b16 %v1913
      %v1985 = vunpack.c.l.b16 %v1914
      %v1986 = vunpack.c.l.b16 %v1915
      %v1987 = vunpack.c.l.b16 %v1916
      %v1988 = vunpack.c.l.b16 %v1917
      %v1989 = vunpack.c.l.b16 %v1918
      %v1990 = vunpack.c.l.b16 %v1919
      %v1991 = vunpack.c.l.b16 %v1920
      %v1992 = vunpack.c.l.b16 %v1921
      %v1993 = vunpack.c.l.b16 %v1922
      %v1994 = vunpack.c.l.b16 %v1923
      %v1995 = vunpack.c.l.b16 %v1924
      %v1996 = vunpack.c.l.b16 %v1925
      %v1997 = vunpack.c.l.b16 %v1926
      %v1998 = vpack.c.b16 %v1983, %v1982
      %v1999 = vpack.c.b16 %v1985, %v1984
      %v2000 = vpack.c.b16 %v1987, %v1986
      %v2001 = vpack.c.b16 %v1989, %v1988
      %v2002 = vpack.c.b16 %v1991, %v1990
      %v2003 = vpack.c.b16 %v1993, %v1992
      %v2004 = vpack.c.b16 %v1995, %v1994
      %v2005 = vpack.c.b16 %v1997, %v1996
      %2014 = vmatprep.subr.bf16.mxu0 0
      %2015 = vmatpush1.bf16.msra.mxu0 %v1998
      %2016 = vmatprep.subr.bf16.mxu0 0
      %2017 = vmatpush1.bf16.msra.mxu0 %v1999
      %2018 = vmatprep.subr.bf16.mxu0 0
      %2019 = vmatpush1.bf16.msra.mxu0 %v2000
      %2020 = vmatprep.subr.bf16.mxu0 0
      %2021 = vmatpush1.bf16.msra.mxu0 %v2001
      %2022 = vmatprep.subr.bf16.mxu0 0
      %2023 = vmatpush1.bf16.msra.mxu0 %v2002
      %2024 = vmatprep.subr.bf16.mxu0 0
      %2025 = vmatpush1.bf16.msra.mxu0 %v2003
      %2026 = vmatprep.subr.bf16.mxu0 0
      %2027 = vmatpush1.bf16.msra.mxu0 %v2004
      %2028 = vmatprep.subr.bf16.mxu0 0
      %2029 = vmatpush1.bf16.msra.mxu0 %v2005
      %2030 = vmatprep.subr.bf16.mxu0 0
      %2031 = vmatpush1.bf16.msra.mxu0 0
      %2032 = vmatprep.subr.bf16.mxu0 0
      %2033 = vmatpush1.bf16.msra.mxu0 0
      %2034 = vmatprep.subr.bf16.mxu0 0
      %2035 = vmatpush1.bf16.msra.mxu0 0
      %2036 = vmatprep.subr.bf16.mxu0 0
      %2037 = vmatpush1.bf16.msra.mxu0 0
      %2038 = vmatprep.subr.bf16.mxu0 0
      %2039 = vmatpush1.bf16.msra.mxu0 0
      %2040 = vmatprep.subr.bf16.mxu0 0
      %2041 = vmatpush1.bf16.msra.mxu0 0
      %2042 = vmatprep.subr.bf16.mxu0 0
      %2043 = vmatpush1.bf16.msra.mxu0 0
      %2044 = vmatprep.subr.bf16.mxu0 0
      %2045 = vmatpush1.bf16.msra.mxu0 0
      %2046 = vmatprep.mubr.bf16.mxu0 0
      %2047 = vmatmul.mubr.bf16.gmra.mrb[0].mxu0 %v1964
      %v2048 = vpop.f32.mrb[0].mxu0
      %v2049 = vadd.f32 %v1932, %v2048
      %v2050 = vpop.f32.mrb[0].mxu0
      %v2051 = vpop.f32.mrb[0].mxu0
      %v2052 = vpop.f32.mrb[0].mxu0
      %2053 = vdwg.mxu0
      %v2054 = vmax.f32 %v2049, 0.0
      %v2055 = vpack.c.bf16 %v2054, %v2054
      %v2056 = vld [vmem:[#allocation17] sm:$0xf]
      %v2057 = vld [vmem:[#allocation17 + $0x4] sm:$0xf]
      %v2058 = vld [vmem:[#allocation17 + $0x8] sm:$0xf]
      %v2059 = vld [vmem:[#allocation17 + $0xc] sm:$0xf]
      %v2060 = vld [vmem:[#allocation17 + $0x10] sm:$0xf]
      %v2061 = vld [vmem:[#allocation17 + $0x14] sm:$0xf]
      %v2062 = vld [vmem:[#allocation17 + $0x18] sm:$0xf]
      %v2063 = vld [vmem:[#allocation17 + $0x1c] sm:$0xf]
      %v2064 = vld [vmem:[#allocation17 + $0x20] sm:$0xf]
      %v2065 = vld [vmem:[#allocation17 + $0x24] sm:$0xf]
      %v2066 = vld [vmem:[#allocation17 + $0x28] sm:$0xf]
      %v2067 = vld [vmem:[#allocation17 + $0x2c] sm:$0xf]
      %v2068 = vld [vmem:[#allocation17 + $0x30] sm:$0xf]
      %v2069 = vld [vmem:[#allocation17 + $0x34] sm:$0xf]
      %v2070 = vld [vmem:[#allocation17 + $0x38] sm:$0xf]
      %v2071 = vld [vmem:[#allocation17 + $0x3c] sm:$0xf]
      %v2072 = vld [vmem:[%s11] sm:$0x1]
      %v2074 = vlaneseq
      %v2075 = vshrl.u32 %v2074, 7
      %v2076 = vsub.s32 0, %v2075
      %v2077 = vrot.slane %v2072, %v2076
      %v2095 = vunpack.c.l.b16 %v2056
      %v2096 = vunpack.c.l.b16 %v2057
      %v2097 = vunpack.c.l.b16 %v2058
      %v2098 = vunpack.c.l.b16 %v2059
      %v2099 = vunpack.c.l.b16 %v2060
      %v2100 = vunpack.c.l.b16 %v2061
      %v2101 = vunpack.c.l.b16 %v2062
      %v2102 = vunpack.c.l.b16 %v2063
      %v2103 = vunpack.c.l.b16 %v2064
      %v2104 = vunpack.c.l.b16 %v2065
      %v2105 = vunpack.c.l.b16 %v2066
      %v2106 = vunpack.c.l.b16 %v2067
      %v2107 = vunpack.c.l.b16 %v2068
      %v2108 = vunpack.c.l.b16 %v2069
      %v2109 = vunpack.c.l.b16 %v2070
      %v2110 = vunpack.c.l.b16 %v2071
      %v2111 = vpack.c.b16 %v2096, %v2095
      %v2112 = vpack.c.b16 %v2098, %v2097
      %v2113 = vpack.c.b16 %v2100, %v2099
      %v2114 = vpack.c.b16 %v2102, %v2101
      %v2115 = vpack.c.b16 %v2104, %v2103
      %v2116 = vpack.c.b16 %v2106, %v2105
      %v2117 = vpack.c.b16 %v2108, %v2107
      %v2118 = vpack.c.b16 %v2110, %v2109
      %2127 = vmatprep.subr.bf16.mxu0 0
      %2128 = vmatpush1.bf16.msra.mxu0 %v2111
      %2129 = vmatprep.subr.bf16.mxu0 0
      %2130 = vmatpush1.bf16.msra.mxu0 %v2112
      %2131 = vmatprep.subr.bf16.mxu0 0
      %2132 = vmatpush1.bf16.msra.mxu0 %v2113
      %2133 = vmatprep.subr.bf16.mxu0 0
      %2134 = vmatpush1.bf16.msra.mxu0 %v2114
      %2135 = vmatprep.subr.bf16.mxu0 0
      %2136 = vmatpush1.bf16.msra.mxu0 %v2115
      %2137 = vmatprep.subr.bf16.mxu0 0
      %2138 = vmatpush1.bf16.msra.mxu0 %v2116
      %2139 = vmatprep.subr.bf16.mxu0 0
      %2140 = vmatpush1.bf16.msra.mxu0 %v2117
      %2141 = vmatprep.subr.bf16.mxu0 0
      %2142 = vmatpush1.bf16.msra.mxu0 %v2118
      %2143 = vmatprep.subr.bf16.mxu0 0
      %2144 = vmatpush1.bf16.msra.mxu0 0
      %2145 = vmatprep.subr.bf16.mxu0 0
      %2146 = vmatpush1.bf16.msra.mxu0 0
      %2147 = vmatprep.subr.bf16.mxu0 0
      %2148 = vmatpush1.bf16.msra.mxu0 0
      %2149 = vmatprep.subr.bf16.mxu0 0
      %2150 = vmatpush1.bf16.msra.mxu0 0
      %2151 = vmatprep.subr.bf16.mxu0 0
      %2152 = vmatpush1.bf16.msra.mxu0 0
      %2153 = vmatprep.subr.bf16.mxu0 0
      %2154 = vmatpush1.bf16.msra.mxu0 0
      %2155 = vmatprep.subr.bf16.mxu0 0
      %2156 = vmatpush1.bf16.msra.mxu0 0
      %2157 = vmatprep.subr.bf16.mxu0 0
      %2158 = vmatpush1.bf16.msra.mxu0 0
      %2159 = vmatprep.mubr.bf16.mxu0 0
      %2160 = vmatmul.mubr.bf16.gmra.mrb[0].mxu0 %v2055
      %v2161 = vpop.f32.mrb[0].mxu0
      %v2162 = vadd.f32 %v2077, %v2161
      %v2163 = vpop.f32.mrb[0].mxu0
      %v2164 = vpop.f32.mrb[0].mxu0
      %v2165 = vpop.f32.mrb[0].mxu0
      %2166 = vdwg.mxu0
      %v2167 = vmax.f32 %v2162, 0.0
      %v2168 = vpack.c.bf16 %v2167, %v2167
      %v2169 = vld [vmem:[#allocation18] sm:$0xf]
      %v2170 = vld [vmem:[#allocation18 + $0x4] sm:$0xf]
      %v2171 = vld [vmem:[#allocation18 + $0x8] sm:$0xf]
      %v2172 = vld [vmem:[#allocation18 + $0xc] sm:$0xf]
      %v2173 = vld [vmem:[#allocation18 + $0x10] sm:$0xf]
      %v2174 = vld [vmem:[#allocation18 + $0x14] sm:$0xf]
      %v2175 = vld [vmem:[#allocation18 + $0x18] sm:$0xf]
      %v2176 = vld [vmem:[#allocation18 + $0x1c] sm:$0xf]
      %v2177 = vld [vmem:[#allocation18 + $0x20] sm:$0xf]
      %v2178 = vld [vmem:[#allocation18 + $0x24] sm:$0xf]
      %v2179 = vld [vmem:[#allocation18 + $0x28] sm:$0xf]
      %v2180 = vld [vmem:[#allocation18 + $0x2c] sm:$0xf]
      %v2181 = vld [vmem:[#allocation18 + $0x30] sm:$0xf]
      %v2182 = vld [vmem:[#allocation18 + $0x34] sm:$0xf]
      %v2183 = vld [vmem:[#allocation18 + $0x38] sm:$0xf]
      %v2184 = vld [vmem:[#allocation18 + $0x3c] sm:$0xf]
      %v2185 = vld [vmem:[%s13] sm:$0x1]
      %v2187 = vlaneseq
      %v2188 = vshrl.u32 %v2187, 7
      %v2189 = vsub.s32 0, %v2188
      %v2190 = vrot.slane %v2185, %v2189
      %v2208 = vunpack.c.l.b16 %v2169
      %v2209 = vunpack.c.l.b16 %v2170
      %v2210 = vunpack.c.l.b16 %v2171
      %v2211 = vunpack.c.l.b16 %v2172
      %v2212 = vunpack.c.l.b16 %v2173
      %v2213 = vunpack.c.l.b16 %v2174
      %v2214 = vunpack.c.l.b16 %v2175
      %v2215 = vunpack.c.l.b16 %v2176
      %v2216 = vunpack.c.l.b16 %v2177
      %v2217 = vunpack.c.l.b16 %v2178
      %v2218 = vunpack.c.l.b16 %v2179
      %v2219 = vunpack.c.l.b16 %v2180
      %v2220 = vunpack.c.l.b16 %v2181
      %v2221 = vunpack.c.l.b16 %v2182
      %v2222 = vunpack.c.l.b16 %v2183
      %v2223 = vunpack.c.l.b16 %v2184
      %v2224 = vpack.c.b16 %v2209, %v2208
      %v2225 = vpack.c.b16 %v2211, %v2210
      %v2226 = vpack.c.b16 %v2213, %v2212
      %v2227 = vpack.c.b16 %v2215, %v2214
      %v2228 = vpack.c.b16 %v2217, %v2216
      %v2229 = vpack.c.b16 %v2219, %v2218
      %v2230 = vpack.c.b16 %v2221, %v2220
      %v2231 = vpack.c.b16 %v2223, %v2222
      %2240 = vmatprep.subr.bf16.mxu0 0
      %2241 = vmatpush1.bf16.msra.mxu0 %v2224
      %2242 = vmatprep.subr.bf16.mxu0 0
      %2243 = vmatpush1.bf16.msra.mxu0 %v2225
      %2244 = vmatprep.subr.bf16.mxu0 0
      %2245 = vmatpush1.bf16.msra.mxu0 %v2226
      %2246 = vmatprep.subr.bf16.mxu0 0
      %2247 = vmatpush1.bf16.msra.mxu0 %v2227
      %2248 = vmatprep.subr.bf16.mxu0 0
      %2249 = vmatpush1.bf16.msra.mxu0 %v2228
      %2250 = vmatprep.subr.bf16.mxu0 0
      %2251 = vmatpush1.bf16.msra.mxu0 %v2229
      %2252 = vmatprep.subr.bf16.mxu0 0
      %2253 = vmatpush1.bf16.msra.mxu0 %v2230
      %2254 = vmatprep.subr.bf16.mxu0 0
      %2255 = vmatpush1.bf16.msra.mxu0 %v2231
      %2256 = vmatprep.subr.bf16.mxu0 0
      %2257 = vmatpush1.bf16.msra.mxu0 0
      %2258 = vmatprep.subr.bf16.mxu0 0
      %2259 = vmatpush1.bf16.msra.mxu0 0
      %2260 = vmatprep.subr.bf16.mxu0 0
      %2261 = vmatpush1.bf16.msra.mxu0 0
      %2262 = vmatprep.subr.bf16.mxu0 0
      %2263 = vmatpush1.bf16.msra.mxu0 0
      %2264 = vmatprep.subr.bf16.mxu0 0
      %2265 = vmatpush1.bf16.msra.mxu0 0
      %2266 = vmatprep.subr.bf16.mxu0 0
      %2267 = vmatpush1.bf16.msra.mxu0 0
      %2268 = vmatprep.subr.bf16.mxu0 0
      %2269 = vmatpush1.bf16.msra.mxu0 0
      %2270 = vmatprep.subr.bf16.mxu0 0
      %2271 = vmatpush1.bf16.msra.mxu0 0
      %2272 = vmatprep.mubr.bf16.mxu0 0
      %2273 = vmatmul.mubr.bf16.gmra.mrb[0].mxu0 %v2168
      %v2274 = vpop.f32.mrb[0].mxu0
      %v2275 = vadd.f32 %v2190, %v2274
      %v2276 = vpop.f32.mrb[0].mxu0
      %v2277 = vpop.f32.mrb[0].mxu0
      %v2278 = vpop.f32.mrb[0].mxu0
      %2279 = vdwg.mxu0
      %v2280 = vmax.f32 %v2275, 0.0
      %v2281 = vpack.c.bf16 %v2280, %v2280
      %v2282 = vld [vmem:[#allocation20] sm:$0xf]
      %v2283 = vld [vmem:[#allocation20 + $0x4] sm:$0xf]
      %v2284 = vld [vmem:[#allocation20 + $0x8] sm:$0xf]
      %v2285 = vld [vmem:[#allocation20 + $0xc] sm:$0xf]
      %v2286 = vld [vmem:[#allocation20 + $0x10] sm:$0xf]
      %v2287 = vld [vmem:[#allocation20 + $0x14] sm:$0xf]
      %v2288 = vld [vmem:[#allocation20 + $0x18] sm:$0xf]
      %v2289 = vld [vmem:[#allocation20 + $0x1c] sm:$0xf]
      %v2290 = vld [vmem:[#allocation20 + $0x20] sm:$0xf]
      %v2291 = vld [vmem:[#allocation20 + $0x24] sm:$0xf]
      %v2292 = vld [vmem:[#allocation20 + $0x28] sm:$0xf]
      %v2293 = vld [vmem:[#allocation20 + $0x2c] sm:$0xf]
      %v2294 = vld [vmem:[#allocation20 + $0x30] sm:$0xf]
      %v2295 = vld [vmem:[#allocation20 + $0x34] sm:$0xf]
      %v2296 = vld [vmem:[#allocation20 + $0x38] sm:$0xf]
      %v2297 = vld [vmem:[#allocation20 + $0x3c] sm:$0xf]
      %v2298 = vld [vmem:[%s15] sm:$0x1]
      %v2300 = vlaneseq
      %v2301 = vshrl.u32 %v2300, 7
      %v2302 = vsub.s32 0, %v2301
      %v2303 = vrot.slane %v2298, %v2302
      %v2321 = vunpack.c.l.b16 %v2282
      %v2322 = vunpack.c.l.b16 %v2283
      %v2323 = vunpack.c.l.b16 %v2284
      %v2324 = vunpack.c.l.b16 %v2285
      %v2325 = vunpack.c.l.b16 %v2286
      %v2326 = vunpack.c.l.b16 %v2287
      %v2327 = vunpack.c.l.b16 %v2288
      %v2328 = vunpack.c.l.b16 %v2289
      %v2329 = vunpack.c.l.b16 %v2290
      %v2330 = vunpack.c.l.b16 %v2291
      %v2331 = vunpack.c.l.b16 %v2292
      %v2332 = vunpack.c.l.b16 %v2293
      %v2333 = vunpack.c.l.b16 %v2294
      %v2334 = vunpack.c.l.b16 %v2295
      %v2335 = vunpack.c.l.b16 %v2296
      %v2336 = vunpack.c.l.b16 %v2297
      %v2337 = vpack.c.b16 %v2322, %v2321
      %v2338 = vpack.c.b16 %v2324, %v2323
      %v2339 = vpack.c.b16 %v2326, %v2325
      %v2340 = vpack.c.b16 %v2328, %v2327
      %v2341 = vpack.c.b16 %v2330, %v2329
      %v2342 = vpack.c.b16 %v2332, %v2331
      %v2343 = vpack.c.b16 %v2334, %v2333
      %v2344 = vpack.c.b16 %v2336, %v2335
      %2353 = vmatprep.subr.bf16.mxu0 0
      %2354 = vmatpush1.bf16.msra.mxu0 %v2337
      %2355 = vmatprep.subr.bf16.mxu0 0
      %2356 = vmatpush1.bf16.msra.mxu0 %v2338
      %2357 = vmatprep.subr.bf16.mxu0 0
      %2358 = vmatpush1.bf16.msra.mxu0 %v2339
      %2359 = vmatprep.subr.bf16.mxu0 0
      %2360 = vmatpush1.bf16.msra.mxu0 %v2340
      %2361 = vmatprep.subr.bf16.mxu0 0
      %2362 = vmatpush1.bf16.msra.mxu0 %v2341
      %2363 = vmatprep.subr.bf16.mxu0 0
      %2364 = vmatpush1.bf16.msra.mxu0 %v2342
      %2365 = vmatprep.subr.bf16.mxu0 0
      %2366 = vmatpush1.bf16.msra.mxu0 %v2343
      %2367 = vmatprep.subr.bf16.mxu0 0
      %2368 = vmatpush1.bf16.msra.mxu0 %v2344
      %2369 = vmatprep.subr.bf16.mxu0 0
      %2370 = vmatpush1.bf16.msra.mxu0 0
      %2371 = vmatprep.subr.bf16.mxu0 0
      %2372 = vmatpush1.bf16.msra.mxu0 0
      %2373 = vmatprep.subr.bf16.mxu0 0
      %2374 = vmatpush1.bf16.msra.mxu0 0
      %2375 = vmatprep.subr.bf16.mxu0 0
      %2376 = vmatpush1.bf16.msra.mxu0 0
      %2377 = vmatprep.subr.bf16.mxu0 0
      %2378 = vmatpush1.bf16.msra.mxu0 0
      %2379 = vmatprep.subr.bf16.mxu0 0
      %2380 = vmatpush1.bf16.msra.mxu0 0
      %2381 = vmatprep.subr.bf16.mxu0 0
      %2382 = vmatpush1.bf16.msra.mxu0 0
      %2383 = vmatprep.subr.bf16.mxu0 0
      %2384 = vmatpush1.bf16.msra.mxu0 0
      %2385 = vmatprep.mubr.bf16.mxu0 0
      %2386 = vmatmul.mubr.bf16.gmra.mrb[0].mxu0 %v2281
      %v2387 = vpop.f32.mrb[0].mxu0
      %v2388 = vadd.f32 %v2303, %v2387
      %v2389 = vpop.f32.mrb[0].mxu0
      %v2390 = vpop.f32.mrb[0].mxu0
      %v2391 = vpop.f32.mrb[0].mxu0
      %2392 = vdwg.mxu0
      %v2393 = vmax.f32 %v2388, 0.0
      %v2394 = vpack.c.bf16 %v2393, %v2393
      %v2395 = vld [vmem:[#allocation21] sm:$0xf]
      %v2396 = vld [vmem:[#allocation21 + $0x4] sm:$0xf]
      %v2397 = vld [vmem:[#allocation21 + $0x8] sm:$0xf]
      %v2398 = vld [vmem:[#allocation21 + $0xc] sm:$0xf]
      %v2399 = vld [vmem:[#allocation21 + $0x10] sm:$0xf]
      %v2400 = vld [vmem:[#allocation21 + $0x14] sm:$0xf]
      %v2401 = vld [vmem:[#allocation21 + $0x18] sm:$0xf]
      %v2402 = vld [vmem:[#allocation21 + $0x1c] sm:$0xf]
      %v2403 = vld [vmem:[#allocation21 + $0x20] sm:$0xf]
      %v2404 = vld [vmem:[#allocation21 + $0x24] sm:$0xf]
      %v2405 = vld [vmem:[#allocation21 + $0x28] sm:$0xf]
      %v2406 = vld [vmem:[#allocation21 + $0x2c] sm:$0xf]
      %v2407 = vld [vmem:[#allocation21 + $0x30] sm:$0xf]
      %v2408 = vld [vmem:[#allocation21 + $0x34] sm:$0xf]
      %v2409 = vld [vmem:[#allocation21 + $0x38] sm:$0xf]
      %v2410 = vld [vmem:[#allocation21 + $0x3c] sm:$0xf]
      %v2411 = vld [vmem:[%s17] sm:$0x1]
      %v2413 = vlaneseq
      %v2414 = vshrl.u32 %v2413, 7
      %v2415 = vsub.s32 0, %v2414
      %v2416 = vrot.slane %v2411, %v2415
      %v2434 = vunpack.c.l.b16 %v2395
      %v2435 = vunpack.c.l.b16 %v2396
      %v2436 = vunpack.c.l.b16 %v2397
      %v2437 = vunpack.c.l.b16 %v2398
      %v2438 = vunpack.c.l.b16 %v2399
      %v2439 = vunpack.c.l.b16 %v2400
      %v2440 = vunpack.c.l.b16 %v2401
      %v2441 = vunpack.c.l.b16 %v2402
      %v2442 = vunpack.c.l.b16 %v2403
      %v2443 = vunpack.c.l.b16 %v2404
      %v2444 = vunpack.c.l.b16 %v2405
      %v2445 = vunpack.c.l.b16 %v2406
      %v2446 = vunpack.c.l.b16 %v2407
      %v2447 = vunpack.c.l.b16 %v2408
      %v2448 = vunpack.c.l.b16 %v2409
      %v2449 = vunpack.c.l.b16 %v2410
      %v2450 = vpack.c.b16 %v2435, %v2434
      %v2451 = vpack.c.b16 %v2437, %v2436
      %v2452 = vpack.c.b16 %v2439, %v2438
      %v2453 = vpack.c.b16 %v2441, %v2440
      %v2454 = vpack.c.b16 %v2443, %v2442
      %v2455 = vpack.c.b16 %v2445, %v2444
      %v2456 = vpack.c.b16 %v2447, %v2446
      %v2457 = vpack.c.b16 %v2449, %v2448
      %2466 = vmatprep.subr.bf16.mxu0 0
      %2467 = vmatpush1.bf16.msra.mxu0 %v2450
      %2468 = vmatprep.subr.bf16.mxu0 0
      %2469 = vmatpush1.bf16.msra.mxu0 %v2451
      %2470 = vmatprep.subr.bf16.mxu0 0
      %2471 = vmatpush1.bf16.msra.mxu0 %v2452
      %2472 = vmatprep.subr.bf16.mxu0 0
      %2473 = vmatpush1.bf16.msra.mxu0 %v2453
      %2474 = vmatprep.subr.bf16.mxu0 0
      %2475 = vmatpush1.bf16.msra.mxu0 %v2454
      %2476 = vmatprep.subr.bf16.mxu0 0
      %2477 = vmatpush1.bf16.msra.mxu0 %v2455
      %2478 = vmatprep.subr.bf16.mxu0 0
      %2479 = vmatpush1.bf16.msra.mxu0 %v2456
      %2480 = vmatprep.subr.bf16.mxu0 0
      %2481 = vmatpush1.bf16.msra.mxu0 %v2457
      %2482 = vmatprep.subr.bf16.mxu0 0
      %2483 = vmatpush1.bf16.msra.mxu0 0
      %2484 = vmatprep.subr.bf16.mxu0 0
      %2485 = vmatpush1.bf16.msra.mxu0 0
      %2486 = vmatprep.subr.bf16.mxu0 0
      %2487 = vmatpush1.bf16.msra.mxu0 0
      %2488 = vmatprep.subr.bf16.mxu0 0
      %2489 = vmatpush1.bf16.msra.mxu0 0
      %2490 = vmatprep.subr.bf16.mxu0 0
      %2491 = vmatpush1.bf16.msra.mxu0 0
      %2492 = vmatprep.subr.bf16.mxu0 0
      %2493 = vmatpush1.bf16.msra.mxu0 0
      %2494 = vmatprep.subr.bf16.mxu0 0
      %2495 = vmatpush1.bf16.msra.mxu0 0
      %2496 = vmatprep.subr.bf16.mxu0 0
      %2497 = vmatpush1.bf16.msra.mxu0 0
      %2498 = vmatprep.mubr.bf16.mxu0 0
      %2499 = vmatmul.mubr.bf16.gmra.mrb[0].mxu0 %v2394
      %v2500 = vpop.f32.mrb[0].mxu0
      %v2501 = vadd.f32 %v2416, %v2500
      %v2502 = vpop.f32.mrb[0].mxu0
      %v2503 = vpop.f32.mrb[0].mxu0
      %v2504 = vpop.f32.mrb[0].mxu0
      %2505 = vdwg.mxu0
      %2506 = vst [vmem:[#allocation23] sm:$0xff] %v2501
    $region121: #{tpu_custom_call.1} parent=1 // pred_fallthru
      _
    // Predicated region
    $region122: #{tpu_custom_call.1} parent=1 // pred_check
      _
    $region123: #{tpu_custom_call.1} parent=1 // pred_check_branch
      %2508 = sbr.rel (0) target = $region125
    $region124: #{tpu_custom_call.1} parent=1 // pred_region
      %s2510 = ssub.s32 128, 128
      %2511 = vsyncadd [#allocation8], %s2510
      %s2513 = sshll.u32 [#allocation23], 4
      %s2514 = int_to_ptr.vmem [resolvable:$true] %s2513
      %2516 = dma.vmem_to_hbm [thread:$0]  %s2514, 128, %s18, [#allocation8]
    $region125: #{tpu_custom_call.1} parent=1 // pred_fallthru
      _
    // Predicated region
    $region126: #{tpu_custom_call.1} parent=1 // pred_check
      _
    $region127: #{tpu_custom_call.1} parent=1 // pred_check_branch
      %2518 = sbr.rel (0) target = $region129
    $region128: #{tpu_custom_call.1} parent=1 // pred_region
      %2519 = dma.done [#allocation8], 128
    $region129: #{tpu_custom_call.1} parent=1 // pred_fallthru
      _
    %2520 = vsyncpa [#allocation7], 1
    %2521 = vsyncpa [#allocation10], 1
    %2522 = vsyncpa [#allocation13], 1
    %2523 = vsyncpa [#allocation16], 1
    %2524 = vsyncpa [#allocation19], 1
    %2525 = vsyncpa [#allocation22], 1
    %2526 = vsyncpa [#allocation8], 1

</llo_original>
